<compile_context>
chip_gen: v7x
topology: tpu7x:2x2x1
jax: 0.10.0
libtpu: 0.0.40
codegen_flags: <defaults>
</compile_context>

<pallas_src>
import numpy as np
import jax
import jax.numpy as jnp
from jax.experimental import pallas as pl
from jax.experimental.pallas import tpu as pltpu


# -----------------------------------------------------------------------------
# Fused Pallas kernel: (template + shape/expr/pose blend) + LBS + landmarks.
# Single invocation, whole batch; everything stays VMEM-resident.
# -----------------------------------------------------------------------------
def _flame_fused_kernel(params_ref, dirs_ref, wt_ref, at_ref, lmat_ref,
                        verts_ref, lmk_ref):
    # params: (B, 64)    [shape(10) | expr(10) | pose_feat(36) | 1.0 | 0(7)]
    # dirs:   (64, 3V)   [shapedirs_active(20); posedirs(36); v_template(1); 0(7)]
    #                     channel-major flattening: column index = c*V + v
    # wt:     (8, V)     lbs_weights^T, joints zero-padded 5 -> 8
    # at:     (B*16, 8)  per-batch A^T (4x4 row-major flat on rows), joints 5 -> 8
    #                     (global translation already folded into rows 3/7/11)
    # lmat:   (V, Lp)    dense barycentric landmark matrix (51 valid columns)
    # verts:  (B*3, V)   row 3*b + c = channel c of batch b (lane-dense on V)
    # lmk:    (B*3, Lp)
    B = params_ref.shape[0]
    V = wt_ref.shape[1]

    # One MXU pass: v_posed = v_template + shape/expr offsets + pose offsets.
    p = params_ref[...].astype(dirs_ref.dtype)
    vp = jnp.dot(p, dirs_ref[...], preferred_element_type=jnp.float32)   # (B, 3V)

    # Per-vertex blended 4x4 transforms for the whole batch, lane-dense on V.
    T_all = jnp.dot(at_ref[...], wt_ref[...],
                    preferred_element_type=jnp.float32)                  # (B*16, V)
    lmat = lmat_ref[...]

    for b in range(B):                      # B is tiny and static -> unroll
        vx = vp[b:b + 1, 0:V]
        vy = vp[b:b + 1, V:2 * V]
        vz = vp[b:b + 1, 2 * V:3 * V]
        T = T_all[b * 16:(b + 1) * 16]      # (16, V), row-major 4x4 rows
        x = T[0:1] * vx + T[1:2] * vy + T[2:3] * vz + T[3:4]
        y = T[4:5] * vx + T[5:6] * vy + T[6:7] * vz + T[7:8]
        z = T[8:9] * vx + T[9:10] * vy + T[10:11] * vz + T[11:12]

        # Direct lane-dense row stores (no concat / sublane relayout).
        verts_ref[pl.ds(3 * b + 0, 1), :] = x
        verts_ref[pl.ds(3 * b + 1, 1), :] = y
        verts_ref[pl.ds(3 * b + 2, 1), :] = z

        # Landmarks ride a tiny MXU dot on the already-resident vertex rows.
        lmk_ref[pl.ds(3 * b + 0, 1), :] = jnp.dot(
            x, lmat, preferred_element_type=jnp.float32)
        lmk_ref[pl.ds(3 * b + 1, 1), :] = jnp.dot(
            y, lmat, preferred_element_type=jnp.float32)
        lmk_ref[pl.ds(3 * b + 2, 1), :] = jnp.dot(
            z, lmat, preferred_element_type=jnp.float32)


def flame_fused_pallas(params, dirs_cm, wt_pad, a_t_rows, lmat,
                       n_verts, n_lmk_pad):
    B = params.shape[0]
    vmem = pl.BlockSpec(memory_space=pltpu.MemorySpace.VMEM)
    return pl.pallas_call(
        _flame_fused_kernel,
        out_shape=(
            jax.ShapeDtypeStruct((B * 3, n_verts), jnp.float32),
            jax.ShapeDtypeStruct((B * 3, n_lmk_pad), jnp.float32),
        ),
        in_specs=[vmem, vmem, vmem, vmem, vmem],
        out_specs=(vmem, vmem),
    )(params, dirs_cm, wt_pad, a_t_rows, lmat)


# -----------------------------------------------------------------------------
# Plain-JAX glue (small sequential pieces, all inside the single jit region)
# -----------------------------------------------------------------------------
def batch_rodrigues(rot_vecs):
    angle = jnp.linalg.norm(rot_vecs + 1e-8, axis=1, keepdims=True)     # (N,1)
    rot_dir = rot_vecs / angle
    cos = jnp.cos(angle)[:, None]                                       # (N,1,1)
    sin = jnp.sin(angle)[:, None]
    rx, ry, rz = rot_dir[:, 0], rot_dir[:, 1], rot_dir[:, 2]
    zeros = jnp.zeros_like(rx)
    K = jnp.stack([zeros, -rz, ry,
                   rz, zeros, -rx,
                   -ry, rx, zeros], axis=1).reshape(-1, 3, 3)
    ident = jnp.eye(3, dtype=rot_vecs.dtype)[None]
    return ident + sin * K + (1.0 - cos) * jnp.matmul(K, K)


def transform_mat(R, t):
    # R: (N,3,3), t: (N,3,1) -> (N,4,4)
    top = jnp.concatenate([R, t], axis=2)
    bottom = jnp.broadcast_to(
        jnp.array([[[0.0, 0.0, 0.0, 1.0]]], dtype=R.dtype),
        (R.shape[0], 1, 4))
    return jnp.concatenate([top, bottom], axis=1)


def batch_rigid_transform(rot_mats, joints, parents):
    # rot_mats: (B,J,3,3), joints: (B,J,3), parents: python list (static)
    B, J = joints.shape[:2]
    joints = joints[..., None]                                          # (B,J,3,1)
    parent_idx = np.asarray(parents[1:], dtype=np.int64)
    rel_joints = jnp.concatenate(
        [joints[:, :1], joints[:, 1:] - joints[:, parent_idx]], axis=1)
    transforms_mat = transform_mat(
        rot_mats.reshape(-1, 3, 3),
        rel_joints.reshape(-1, 3, 1)).reshape(B, J, 4, 4)
    chain = [transforms_mat[:, 0]]
    for i in range(1, J):
        chain.append(jnp.matmul(chain[parents[i]], transforms_mat[:, i]))
    transforms = jnp.stack(chain, axis=1)                               # (B,J,4,4)
    posed_joints = transforms[:, :, :3, 3]
    joints_homogen = jnp.concatenate(
        [joints, jnp.zeros((B, J, 1, 1), dtype=joints.dtype)], axis=2)  # (B,J,4,1)
    tmp = jnp.matmul(transforms, joints_homogen)                        # (B,J,4,1)
    pad = jnp.concatenate(
        [jnp.zeros((B, J, 4, 3), dtype=joints.dtype), tmp], axis=3)
    rel_transforms = transforms - pad
    return posed_joints, rel_transforms


# -----------------------------------------------------------------------------
# FLAME decoder (synthetic weights, deterministic init)
# -----------------------------------------------------------------------------
class FlamePallas:
    def __init__(self, key, batch_size=2, n_verts=512, n_faces=1024,
                 shape_params=10, expression_params=10, n_lmk=51,
                 dirs_dtype=jnp.bfloat16):
        self.batch_size = batch_size
        self.V = n_verts
        self.J = 5
        self.parents = [-1, 0, 1, 1, 1]            # FLAME kinematic tree
        self.use_face_contour = False
        self.use_3D_translation = True
        self.n_shape = shape_params
        self.n_expr = expression_params
        self.n_lmk = n_lmk

        ks = jax.random.split(key, 10)
        V, J = self.V, self.J
        self.v_template = (jax.random.normal(ks[0], (V, 3)) * 0.1
                           ).astype(jnp.float32)
        shapedirs = (jax.random.normal(ks[1], (V, 3, 400)) * 0.01
                     ).astype(jnp.float32)
        posedirs_raw = (jax.random.normal(ks[2], (V, 3, 36)) * 0.01
                        ).astype(jnp.float32)
        jreg = jax.random.uniform(ks[3], (J, V), dtype=jnp.float32)
        self.J_regressor = jreg / jnp.sum(jreg, axis=1, keepdims=True)
        w = jax.random.uniform(ks[4], (V, J), dtype=jnp.float32)
        self.lbs_weights = w / jnp.sum(w, axis=1, keepdims=True)        # rows sum to 1
        self.faces = jax.random.randint(ks[5], (n_faces, 3), 0, V,
                                        dtype=jnp.int32)
        self.lmk_faces_idx = jax.random.randint(ks[6], (n_lmk,), 0, n_faces,
                                                dtype=jnp.int32)
        bary = jax.random.uniform(ks[7], (n_lmk, 3), dtype=jnp.float32)
        self.lmk_bary_coords = bary / jnp.sum(bary, axis=1, keepdims=True)

        # zero-filled default parameters (frozen, as in the torch module).
        # shape_betas / expression_betas are identically zero -> those 380
        # betas columns are folded away exactly (only 20 active columns kept).
        self.eye_pose_params = jnp.zeros((batch_size, 6), jnp.float32)
        self.neck_pose_params = jnp.zeros((batch_size, 3), jnp.float32)
        self.transl_params = jnp.zeros((batch_size, 3), jnp.float32)

        # ---- pre-folded / re-laid-out buffers for the fused kernel ----
        active_idx = np.concatenate([np.arange(shape_params),
                                     300 + np.arange(expression_params)])
        self.n_active = int(active_idx.shape[0])                        # 20
        sd_active = shapedirs[:, :, active_idx]                         # (V, 3, 20)

        # channel-major flattening (index = c*V + v): lane axis is V (512)
        vt_cm = jnp.transpose(self.v_template, (1, 0)).reshape(1, 3 * V)
        sd_cm = jnp.transpose(sd_active, (2, 1, 0)).reshape(self.n_active, 3 * V)
        pd_cm = jnp.transpose(posedirs_raw, (2, 1, 0)).reshape(36, 3 * V)
        self.k_total = 64
        k_pad = self.k_total - (self.n_active + 36) - 1                 # 7
        # [shapedirs_active ; posedirs ; v_template ; zero pad] -> one MXU slab
        self.dirs_cm = jnp.concatenate(
            [sd_cm, pd_cm, vt_cm, jnp.zeros((k_pad, 3 * V), jnp.float32)],
            axis=0).astype(dirs_dtype)                                  # (64, 3V)

        # lbs_weights^T, joints padded 5 -> 8 with zero rows (f32: tiny, exact)
        self.wt_pad = jnp.pad(self.lbs_weights.T, ((0, 8 - J), (0, 0)))  # (8, V)

        # joint regressor pre-folded (joints computed in tiny plain-JAX math)
        self.J_template = jnp.matmul(self.J_regressor, self.v_template)        # (J,3)
        self.sd_joint = jnp.einsum('jv,vck->jck', self.J_regressor, sd_active)  # (J,3,20)

        # dense barycentric landmark matrix: (V, Lp), 51 valid columns.
        self.n_lmk_pad = 128
        faces_np = np.asarray(self.faces)
        lmk_face_np = np.asarray(self.lmk_faces_idx)
        bary_np = np.asarray(self.lmk_bary_coords)
        lmk_faces = faces_np[lmk_face_np]                                # (L, 3)
        lmat = np.zeros((V, self.n_lmk_pad), np.float32)
        for l in range(n_lmk):
            for k in range(3):
                lmat[lmk_faces[l, k], l] += bary_np[l, k]
        self.lmat = jnp.asarray(lmat)

        # single jit region over the whole forward pass
        self._fwd = jax.jit(self._forward)

    # ---------------------------------------------------------------- forward
    def _forward(self, shape_params, expression_params, pose_params,
                 neck_pose, eye_pose, transl):
        B, V, J = shape_params.shape[0], self.V, self.J
        full_pose = jnp.concatenate(
            [pose_params[:, :3], neck_pose, pose_params[:, 3:], eye_pose],
            axis=1)                                                      # (B, 15)
        betas_active = jnp.concatenate([shape_params, expression_params], axis=1)

        rot_mats = batch_rodrigues(full_pose.reshape(-1, 3)).reshape(B, J, 3, 3)
        ident = jnp.eye(3, dtype=jnp.float32)
        pose_feature = (rot_mats[:, 1:] - ident).reshape(B, 36)

        # joints = J_regressor @ v_shaped (regressor pre-folded; shape/expr only)
        joints = self.J_template[None] + jnp.einsum(
            'bk,jck->bjc', betas_active, self.sd_joint)                  # (B, J, 3)
        _, A = batch_rigid_transform(rot_mats, joints, self.parents)     # (B,J,4,4)

        # Fold the global translation into every joint's translation column:
        # exact because lbs weights (and barycentric coords) sum to 1.
        if self.use_3D_translation:
            A = A.at[:, :, :3, 3].add(transl[:, None, :])

        # per-batch transposed, joint-padded relative transforms -> (B*16, 8)
        a_t = jnp.transpose(A.reshape(B, J, 16), (0, 2, 1))              # (B,16,J)
        a_t = jnp.pad(a_t, ((0, 0), (0, 0), (0, 8 - J))).reshape(B * 16, 8)

        # fused kernel params: [betas(20) | pose_feature(36) | 1.0 | zeros(7)]
        params = jnp.concatenate(
            [betas_active, pose_feature,
             jnp.ones((B, 1), jnp.float32),
             jnp.zeros((B, self.k_total - self.n_active - 36 - 1), jnp.float32)],
            axis=1)                                                      # (B, 64)

        verts_rows, lmk_rows = flame_fused_pallas(
            params, self.dirs_cm, self.wt_pad, a_t, self.lmat,
            V, self.n_lmk_pad)

        vertices = jnp.transpose(verts_rows.reshape(B, 3, V), (0, 2, 1))  # (B,V,3)
        landmarks = jnp.transpose(
            lmk_rows.reshape(B, 3, self.n_lmk_pad)[:, :, :self.n_lmk],
            (0, 2, 1))                                                    # (B,L,3)
        return vertices, landmarks

    def __call__(self, shape_params, expression_params, pose_params,
                 neck_pose=None, eye_pose=None, transl=None):
        neck = neck_pose if neck_pose is not None else self.neck_pose_params
        eye = eye_pose if eye_pose is not None else self.eye_pose_params
        trans = transl if transl is not None else self.transl_params
        return self._fwd(shape_params, expression_params, pose_params,
                         neck, eye, trans)


# -----------------------------------------------------------------------------
if __name__ == "__main__":
    root = jax.random.PRNGKey(0)
    k_model, k_shape, k_expr, k_pose = jax.random.split(root, 4)

    model = FlamePallas(k_model, batch_size=2, n_verts=512, n_faces=1024,
                        shape_params=10, expression_params=10, n_lmk=51)

    shape_params = (jax.random.normal(k_shape, (2, 10)) * 0.5).astype(jnp.float32)
    expression_params = (jax.random.normal(k_expr, (2, 10)) * 0.5).astype(jnp.float32)
    pose_params = (jax.random.normal(k_pose, (2, 6)) * 0.2).astype(jnp.float32)

    vertices, landmarks = model(shape_params, expression_params, pose_params)
    jax.block_until_ready((vertices, landmarks))

    assert vertices.shape == (2, 512, 3), vertices.shape
    assert landmarks.shape == (2, 51, 3), landmarks.shape
    assert bool(jnp.all(jnp.isfinite(vertices))) and bool(jnp.all(jnp.isfinite(landmarks)))
    print("KERNEL_OK")
</pallas_src>

<mosaic_0001>
module attributes {stable_mosaic.version = 11 : i64} {
  func.func @_flame_fused_kernel(%arg0: memref<2x64xf32, #tpu.memory_space<vmem>>, %arg1: memref<64x1536xbf16, #tpu.memory_space<vmem>>, %arg2: memref<8x512xf32, #tpu.memory_space<vmem>>, %arg3: memref<32x8xf32, #tpu.memory_space<vmem>>, %arg4: memref<512x128xf32, #tpu.memory_space<vmem>>, %arg5: memref<6x512xf32, #tpu.memory_space<vmem>>, %arg6: memref<6x128xf32, #tpu.memory_space<vmem>>) attributes {dimension_semantics = [], scalar_prefetch = 0 : i64, scratch_operands = 0 : i64, tpu.core_type = #tpu.core_type<tc>} {
    %c0 = arith.constant 0 : index
    %c0_0 = arith.constant 0 : index
    %0 = vector.load %arg0[%c0, %c0_0] : memref<2x64xf32, #tpu.memory_space<vmem>>, vector<2x64xf32>
    %1 = arith.truncf %0 : vector<2x64xf32> to vector<2x64xbf16>
    %c0_1 = arith.constant 0 : index
    %c0_2 = arith.constant 0 : index
    %2 = vector.load %arg1[%c0_1, %c0_2] : memref<64x1536xbf16, #tpu.memory_space<vmem>>, vector<64x1536xbf16>
    %cst = arith.constant dense<0.000000e+00> : vector<2x1536xf32>
    %3 = tpu.matmul %1, %2, %cst {dimension_numbers = #tpu.dot_dimension_numbers<[1], [0], [0], [1], [0, 0, 1, 1], [], []>} : vector<2x64xbf16>, vector<64x1536xbf16>, vector<2x1536xf32> -> vector<2x1536xf32>
    %c0_3 = arith.constant 0 : index
    %c0_4 = arith.constant 0 : index
    %4 = vector.load %arg3[%c0_3, %c0_4] : memref<32x8xf32, #tpu.memory_space<vmem>>, vector<32x8xf32>
    %c0_5 = arith.constant 0 : index
    %c0_6 = arith.constant 0 : index
    %5 = vector.load %arg2[%c0_5, %c0_6] : memref<8x512xf32, #tpu.memory_space<vmem>>, vector<8x512xf32>
    %cst_7 = arith.constant dense<0.000000e+00> : vector<32x512xf32>
    %6 = tpu.matmul %4, %5, %cst_7 {dimension_numbers = #tpu.dot_dimension_numbers<[1], [0], [0], [1], [0, 0, 1, 1], [], []>} : vector<32x8xf32>, vector<8x512xf32>, vector<32x512xf32> -> vector<32x512xf32>
    %c0_8 = arith.constant 0 : index
    %c0_9 = arith.constant 0 : index
    %7 = vector.load %arg4[%c0_8, %c0_9] : memref<512x128xf32, #tpu.memory_space<vmem>>, vector<512x128xf32>
    %8 = vector.extract_strided_slice %3 {offsets = [0, 0], sizes = [1, 512], strides = [1, 1]} : vector<2x1536xf32> to vector<1x512xf32>
    %9 = vector.extract_strided_slice %3 {offsets = [0, 512], sizes = [1, 512], strides = [1, 1]} : vector<2x1536xf32> to vector<1x512xf32>
    %10 = vector.extract_strided_slice %3 {offsets = [0, 1024], sizes = [1, 512], strides = [1, 1]} : vector<2x1536xf32> to vector<1x512xf32>
    %11 = vector.extract_strided_slice %6 {offsets = [0, 0], sizes = [16, 512], strides = [1, 1]} : vector<32x512xf32> to vector<16x512xf32>
    %12 = vector.extract_strided_slice %11 {offsets = [0, 0], sizes = [1, 512], strides = [1, 1]} : vector<16x512xf32> to vector<1x512xf32>
    %13 = arith.mulf %12, %8 : vector<1x512xf32>
    %14 = vector.extract_strided_slice %11 {offsets = [1, 0], sizes = [1, 512], strides = [1, 1]} : vector<16x512xf32> to vector<1x512xf32>
    %15 = arith.mulf %14, %9 : vector<1x512xf32>
    %16 = arith.addf %13, %15 : vector<1x512xf32>
    %17 = vector.extract_strided_slice %11 {offsets = [2, 0], sizes = [1, 512], strides = [1, 1]} : vector<16x512xf32> to vector<1x512xf32>
    %18 = arith.mulf %17, %10 : vector<1x512xf32>
    %19 = arith.addf %16, %18 : vector<1x512xf32>
    %20 = vector.extract_strided_slice %11 {offsets = [3, 0], sizes = [1, 512], strides = [1, 1]} : vector<16x512xf32> to vector<1x512xf32>
    %21 = arith.addf %19, %20 : vector<1x512xf32>
    %22 = vector.extract_strided_slice %11 {offsets = [4, 0], sizes = [1, 512], strides = [1, 1]} : vector<16x512xf32> to vector<1x512xf32>
    %23 = arith.mulf %22, %8 : vector<1x512xf32>
    %24 = vector.extract_strided_slice %11 {offsets = [5, 0], sizes = [1, 512], strides = [1, 1]} : vector<16x512xf32> to vector<1x512xf32>
    %25 = arith.mulf %24, %9 : vector<1x512xf32>
    %26 = arith.addf %23, %25 : vector<1x512xf32>
    %27 = vector.extract_strided_slice %11 {offsets = [6, 0], sizes = [1, 512], strides = [1, 1]} : vector<16x512xf32> to vector<1x512xf32>
    %28 = arith.mulf %27, %10 : vector<1x512xf32>
    %29 = arith.addf %26, %28 : vector<1x512xf32>
    %30 = vector.extract_strided_slice %11 {offsets = [7, 0], sizes = [1, 512], strides = [1, 1]} : vector<16x512xf32> to vector<1x512xf32>
    %31 = arith.addf %29, %30 : vector<1x512xf32>
    %32 = vector.extract_strided_slice %11 {offsets = [8, 0], sizes = [1, 512], strides = [1, 1]} : vector<16x512xf32> to vector<1x512xf32>
    %33 = arith.mulf %32, %8 : vector<1x512xf32>
    %34 = vector.extract_strided_slice %11 {offsets = [9, 0], sizes = [1, 512], strides = [1, 1]} : vector<16x512xf32> to vector<1x512xf32>
    %35 = arith.mulf %34, %9 : vector<1x512xf32>
    %36 = arith.addf %33, %35 : vector<1x512xf32>
    %37 = vector.extract_strided_slice %11 {offsets = [10, 0], sizes = [1, 512], strides = [1, 1]} : vector<16x512xf32> to vector<1x512xf32>
    %38 = arith.mulf %37, %10 : vector<1x512xf32>
    %39 = arith.addf %36, %38 : vector<1x512xf32>
    %40 = vector.extract_strided_slice %11 {offsets = [11, 0], sizes = [1, 512], strides = [1, 1]} : vector<16x512xf32> to vector<1x512xf32>
    %41 = arith.addf %39, %40 : vector<1x512xf32>
    %c0_10 = arith.constant 0 : index
    %c0_11 = arith.constant 0 : index
    %42 = vector.load %arg5[%c0_10, %c0_11] : memref<6x512xf32, #tpu.memory_space<vmem>>, vector<1x512xf32>
    tpu.vector_store %arg5[%c0_10, %c0_11], %21 {strides = array<i32>} : memref<6x512xf32, #tpu.memory_space<vmem>>, vector<1x512xf32>,
    %c1 = arith.constant 1 : index
    %c0_12 = arith.constant 0 : index
    %43 = vector.load %arg5[%c1, %c0_12] : memref<6x512xf32, #tpu.memory_space<vmem>>, vector<1x512xf32>
    tpu.vector_store %arg5[%c1, %c0_12], %31 {strides = array<i32>} : memref<6x512xf32, #tpu.memory_space<vmem>>, vector<1x512xf32>,
    %c2 = arith.constant 2 : index
    %c0_13 = arith.constant 0 : index
    %44 = vector.load %arg5[%c2, %c0_13] : memref<6x512xf32, #tpu.memory_space<vmem>>, vector<1x512xf32>
    tpu.vector_store %arg5[%c2, %c0_13], %41 {strides = array<i32>} : memref<6x512xf32, #tpu.memory_space<vmem>>, vector<1x512xf32>,
    %cst_14 = arith.constant dense<0.000000e+00> : vector<1x128xf32>
    %45 = tpu.matmul %21, %7, %cst_14 {dimension_numbers = #tpu.dot_dimension_numbers<[1], [0], [0], [1], [0, 0, 1, 1], [], []>} : vector<1x512xf32>, vector<512x128xf32>, vector<1x128xf32> -> vector<1x128xf32>
    %c0_15 = arith.constant 0 : index
    %c0_16 = arith.constant 0 : index
    %46 = vector.load %arg6[%c0_15, %c0_16] : memref<6x128xf32, #tpu.memory_space<vmem>>, vector<1x128xf32>
    tpu.vector_store %arg6[%c0_15, %c0_16], %45 {strides = array<i32>} : memref<6x128xf32, #tpu.memory_space<vmem>>, vector<1x128xf32>,
    %cst_17 = arith.constant dense<0.000000e+00> : vector<1x128xf32>
    %47 = tpu.matmul %31, %7, %cst_17 {dimension_numbers = #tpu.dot_dimension_numbers<[1], [0], [0], [1], [0, 0, 1, 1], [], []>} : vector<1x512xf32>, vector<512x128xf32>, vector<1x128xf32> -> vector<1x128xf32>
    %c1_18 = arith.constant 1 : index
    %c0_19 = arith.constant 0 : index
    %48 = vector.load %arg6[%c1_18, %c0_19] : memref<6x128xf32, #tpu.memory_space<vmem>>, vector<1x128xf32>
    tpu.vector_store %arg6[%c1_18, %c0_19], %47 {strides = array<i32>} : memref<6x128xf32, #tpu.memory_space<vmem>>, vector<1x128xf32>,
    %cst_20 = arith.constant dense<0.000000e+00> : vector<1x128xf32>
    %49 = tpu.matmul %41, %7, %cst_20 {dimension_numbers = #tpu.dot_dimension_numbers<[1], [0], [0], [1], [0, 0, 1, 1], [], []>} : vector<1x512xf32>, vector<512x128xf32>, vector<1x128xf32> -> vector<1x128xf32>
    %c2_21 = arith.constant 2 : index
    %c0_22 = arith.constant 0 : index
    %50 = vector.load %arg6[%c2_21, %c0_22] : memref<6x128xf32, #tpu.memory_space<vmem>>, vector<1x128xf32>
    tpu.vector_store %arg6[%c2_21, %c0_22], %49 {strides = array<i32>} : memref<6x128xf32, #tpu.memory_space<vmem>>, vector<1x128xf32>,
    %51 = vector.extract_strided_slice %3 {offsets = [1, 0], sizes = [1, 512], strides = [1, 1]} : vector<2x1536xf32> to vector<1x512xf32>
    %52 = vector.extract_strided_slice %3 {offsets = [1, 512], sizes = [1, 512], strides = [1, 1]} : vector<2x1536xf32> to vector<1x512xf32>
    %53 = vector.extract_strided_slice %3 {offsets = [1, 1024], sizes = [1, 512], strides = [1, 1]} : vector<2x1536xf32> to vector<1x512xf32>
    %54 = vector.extract_strided_slice %6 {offsets = [16, 0], sizes = [16, 512], strides = [1, 1]} : vector<32x512xf32> to vector<16x512xf32>
    %55 = vector.extract_strided_slice %54 {offsets = [0, 0], sizes = [1, 512], strides = [1, 1]} : vector<16x512xf32> to vector<1x512xf32>
    %56 = arith.mulf %55, %51 : vector<1x512xf32>
    %57 = vector.extract_strided_slice %54 {offsets = [1, 0], sizes = [1, 512], strides = [1, 1]} : vector<16x512xf32> to vector<1x512xf32>
    %58 = arith.mulf %57, %52 : vector<1x512xf32>
    %59 = arith.addf %56, %58 : vector<1x512xf32>
    %60 = vector.extract_strided_slice %54 {offsets = [2, 0], sizes = [1, 512], strides = [1, 1]} : vector<16x512xf32> to vector<1x512xf32>
    %61 = arith.mulf %60, %53 : vector<1x512xf32>
    %62 = arith.addf %59, %61 : vector<1x512xf32>
    %63 = vector.extract_strided_slice %54 {offsets = [3, 0], sizes = [1, 512], strides = [1, 1]} : vector<16x512xf32> to vector<1x512xf32>
    %64 = arith.addf %62, %63 : vector<1x512xf32>
    %65 = vector.extract_strided_slice %54 {offsets = [4, 0], sizes = [1, 512], strides = [1, 1]} : vector<16x512xf32> to vector<1x512xf32>
    %66 = arith.mulf %65, %51 : vector<1x512xf32>
    %67 = vector.extract_strided_slice %54 {offsets = [5, 0], sizes = [1, 512], strides = [1, 1]} : vector<16x512xf32> to vector<1x512xf32>
    %68 = arith.mulf %67, %52 : vector<1x512xf32>
    %69 = arith.addf %66, %68 : vector<1x512xf32>
    %70 = vector.extract_strided_slice %54 {offsets = [6, 0], sizes = [1, 512], strides = [1, 1]} : vector<16x512xf32> to vector<1x512xf32>
    %71 = arith.mulf %70, %53 : vector<1x512xf32>
    %72 = arith.addf %69, %71 : vector<1x512xf32>
    %73 = vector.extract_strided_slice %54 {offsets = [7, 0], sizes = [1, 512], strides = [1, 1]} : vector<16x512xf32> to vector<1x512xf32>
    %74 = arith.addf %72, %73 : vector<1x512xf32>
    %75 = vector.extract_strided_slice %54 {offsets = [8, 0], sizes = [1, 512], strides = [1, 1]} : vector<16x512xf32> to vector<1x512xf32>
    %76 = arith.mulf %75, %51 : vector<1x512xf32>
    %77 = vector.extract_strided_slice %54 {offsets = [9, 0], sizes = [1, 512], strides = [1, 1]} : vector<16x512xf32> to vector<1x512xf32>
    %78 = arith.mulf %77, %52 : vector<1x512xf32>
    %79 = arith.addf %76, %78 : vector<1x512xf32>
    %80 = vector.extract_strided_slice %54 {offsets = [10, 0], sizes = [1, 512], strides = [1, 1]} : vector<16x512xf32> to vector<1x512xf32>
    %81 = arith.mulf %80, %53 : vector<1x512xf32>
    %82 = arith.addf %79, %81 : vector<1x512xf32>
    %83 = vector.extract_strided_slice %54 {offsets = [11, 0], sizes = [1, 512], strides = [1, 1]} : vector<16x512xf32> to vector<1x512xf32>
    %84 = arith.addf %82, %83 : vector<1x512xf32>
    %c3 = arith.constant 3 : index
    %c0_23 = arith.constant 0 : index
    %85 = vector.load %arg5[%c3, %c0_23] : memref<6x512xf32, #tpu.memory_space<vmem>>, vector<1x512xf32>
    tpu.vector_store %arg5[%c3, %c0_23], %64 {strides = array<i32>} : memref<6x512xf32, #tpu.memory_space<vmem>>, vector<1x512xf32>,
    %c4 = arith.constant 4 : index
    %c0_24 = arith.constant 0 : index
    %86 = vector.load %arg5[%c4, %c0_24] : memref<6x512xf32, #tpu.memory_space<vmem>>, vector<1x512xf32>
    tpu.vector_store %arg5[%c4, %c0_24], %74 {strides = array<i32>} : memref<6x512xf32, #tpu.memory_space<vmem>>, vector<1x512xf32>,
    %c5 = arith.constant 5 : index
    %c0_25 = arith.constant 0 : index
    %87 = vector.load %arg5[%c5, %c0_25] : memref<6x512xf32, #tpu.memory_space<vmem>>, vector<1x512xf32>
    tpu.vector_store %arg5[%c5, %c0_25], %84 {strides = array<i32>} : memref<6x512xf32, #tpu.memory_space<vmem>>, vector<1x512xf32>,
    %cst_26 = arith.constant dense<0.000000e+00> : vector<1x128xf32>
    %88 = tpu.matmul %64, %7, %cst_26 {dimension_numbers = #tpu.dot_dimension_numbers<[1], [0], [0], [1], [0, 0, 1, 1], [], []>} : vector<1x512xf32>, vector<512x128xf32>, vector<1x128xf32> -> vector<1x128xf32>
    %c3_27 = arith.constant 3 : index
    %c0_28 = arith.constant 0 : index
    %89 = vector.load %arg6[%c3_27, %c0_28] : memref<6x128xf32, #tpu.memory_space<vmem>>, vector<1x128xf32>
    tpu.vector_store %arg6[%c3_27, %c0_28], %88 {strides = array<i32>} : memref<6x128xf32, #tpu.memory_space<vmem>>, vector<1x128xf32>,
    %cst_29 = arith.constant dense<0.000000e+00> : vector<1x128xf32>
    %90 = tpu.matmul %74, %7, %cst_29 {dimension_numbers = #tpu.dot_dimension_numbers<[1], [0], [0], [1], [0, 0, 1, 1], [], []>} : vector<1x512xf32>, vector<512x128xf32>, vector<1x128xf32> -> vector<1x128xf32>
    %c4_30 = arith.constant 4 : index
    %c0_31 = arith.constant 0 : index
    %91 = vector.load %arg6[%c4_30, %c0_31] : memref<6x128xf32, #tpu.memory_space<vmem>>, vector<1x128xf32>
    tpu.vector_store %arg6[%c4_30, %c0_31], %90 {strides = array<i32>} : memref<6x128xf32, #tpu.memory_space<vmem>>, vector<1x128xf32>,
    %cst_32 = arith.constant dense<0.000000e+00> : vector<1x128xf32>
    %92 = tpu.matmul %84, %7, %cst_32 {dimension_numbers = #tpu.dot_dimension_numbers<[1], [0], [0], [1], [0, 0, 1, 1], [], []>} : vector<1x512xf32>, vector<512x128xf32>, vector<1x128xf32> -> vector<1x128xf32>
    %c5_33 = arith.constant 5 : index
    %c0_34 = arith.constant 0 : index
    %93 = vector.load %arg6[%c5_33, %c0_34] : memref<6x128xf32, #tpu.memory_space<vmem>>, vector<1x128xf32>
    tpu.vector_store %arg6[%c5_33, %c0_34], %92 {strides = array<i32>} : memref<6x128xf32, #tpu.memory_space<vmem>>, vector<1x128xf32>,
    return
  }
}

</mosaic_0001>

<llo_original>
// kernel: _forward.1
$region0: #{_forward.1}
  #allocation0 [shape = 'u32[]', space=smem, size = 0x4, offset = 0x4, fixed_abs, tag = 'smem constant byte address 0x4 - core index']
  #allocation1 [shape = 'u32[144,128]{1,0:T(1,128)}', space=vmem, size = 0x12000, scoped, tag = 'internal scratch']
  %s0 = inlined_call_operand.vmem [shape: f32[2,64], index: 0, kind: input, shape index: {}]
  %s1 = inlined_call_operand.vmem [shape: bf16[64,1536], index: 1, kind: input, shape index: {}]
  %s2 = inlined_call_operand.vmem [shape: f32[8,512], index: 2, kind: input, shape index: {}]
  %s3 = inlined_call_operand.vmem [shape: f32[32,8], index: 3, kind: input, shape index: {}]
  %s4 = inlined_call_operand.vmem [shape: f32[512,128], index: 4, kind: input, shape index: {}]
  %s5 = inlined_call_operand.vmem [shape: f32[6,512], index: 5, kind: output, shape index: {0}]
  %s6 = inlined_call_operand.vmem [shape: f32[6,128], index: 6, kind: output, shape index: {1}]
  %7 = xla_tuple %s5, %s6
  %s8 = sld [smem:[#allocation0]]
  $region38: #{_forward.1} parent=0
    _
  %s10 = ssub.s32 1, %s8
  %s11 = scalar_select 0, %s10, %s8
  // Predicated region
  $region2: #{_forward.1} parent=0 // pred_check
    _
  $region3: #{_forward.1} parent=0 // pred_check_branch
    %13 = sbr.rel (0) target = $region5
  $region4: #{_forward.1} parent=0 // pred_region
    _
  $region5: #{_forward.1} parent=0 // pred_fallthru
    _
  // Predicated region
  $region6: #{_forward.1} parent=0 // pred_check
    _
  $region7: #{_forward.1} parent=0 // pred_check_branch
    %15 = sbr.rel (0) target = $region9
  $region8: #{_forward.1} parent=0 // pred_region
    _
  $region9: #{_forward.1} parent=0 // pred_fallthru
    _
  // Predicated region
  $region10: #{_forward.1} parent=0 // pred_check
    _
  $region11: #{_forward.1} parent=0 // pred_check_branch
    %17 = sbr.rel (0) target = $region13
  $region12: #{_forward.1} parent=0 // pred_region
    _
  $region13: #{_forward.1} parent=0 // pred_fallthru
    _
  // Predicated region
  $region14: #{_forward.1} parent=0 // pred_check
    _
  $region15: #{_forward.1} parent=0 // pred_check_branch
    %19 = sbr.rel (0) target = $region17
  $region16: #{_forward.1} parent=0 // pred_region
    _
  $region17: #{_forward.1} parent=0 // pred_fallthru
    _
  // Predicated region
  $region18: #{_forward.1} parent=0 // pred_check
    _
  $region19: #{_forward.1} parent=0 // pred_check_branch
    %21 = sbr.rel (0) target = $region21
  $region20: #{_forward.1} parent=0 // pred_region
    _
  $region21: #{_forward.1} parent=0 // pred_fallthru
    _
  %v23 = vld [vmem:[%s0] sm:$0x3]
  %v24 = vpack.c.bf16 %v23, %v23
  %v25 = vld [vmem:[%s1] sm:$0xff]
  %v26 = vld [vmem:[%s1 + $0x8] sm:$0xff]
  %v27 = vld [vmem:[%s1 + $0x10] sm:$0xff]
  %v28 = vld [vmem:[%s1 + $0x18] sm:$0xff]
  %v29 = vld [vmem:[%s1 + $0x20] sm:$0xff]
  %v30 = vld [vmem:[%s1 + $0x28] sm:$0xff]
  %v31 = vld [vmem:[%s1 + $0x30] sm:$0xff]
  %v32 = vld [vmem:[%s1 + $0x38] sm:$0xff]
  %v33 = vld [vmem:[%s1 + $0x40] sm:$0xff]
  %v34 = vld [vmem:[%s1 + $0x48] sm:$0xff]
  %v35 = vld [vmem:[%s1 + $0x50] sm:$0xff]
  %v36 = vld [vmem:[%s1 + $0x58] sm:$0xff]
  %v37 = vld [vmem:[%s1 + $0x60] sm:$0xff]
  %v38 = vld [vmem:[%s1 + $0x68] sm:$0xff]
  %v39 = vld [vmem:[%s1 + $0x70] sm:$0xff]
  %v40 = vld [vmem:[%s1 + $0x78] sm:$0xff]
  %v41 = vld [vmem:[%s1 + $0x80] sm:$0xff]
  %v42 = vld [vmem:[%s1 + $0x88] sm:$0xff]
  %v43 = vld [vmem:[%s1 + $0x90] sm:$0xff]
  %v44 = vld [vmem:[%s1 + $0x98] sm:$0xff]
  %v45 = vld [vmem:[%s1 + $0xa0] sm:$0xff]
  %v46 = vld [vmem:[%s1 + $0xa8] sm:$0xff]
  %v47 = vld [vmem:[%s1 + $0xb0] sm:$0xff]
  %v48 = vld [vmem:[%s1 + $0xb8] sm:$0xff]
  %v49 = vld [vmem:[%s1 + $0xc0] sm:$0xff]
  %v50 = vld [vmem:[%s1 + $0xc8] sm:$0xff]
  %v51 = vld [vmem:[%s1 + $0xd0] sm:$0xff]
  %v52 = vld [vmem:[%s1 + $0xd8] sm:$0xff]
  %v53 = vld [vmem:[%s1 + $0xe0] sm:$0xff]
  %v54 = vld [vmem:[%s1 + $0xe8] sm:$0xff]
  %v55 = vld [vmem:[%s1 + $0xf0] sm:$0xff]
  %v56 = vld [vmem:[%s1 + $0xf8] sm:$0xff]
  %v57 = vld [vmem:[%s1 + $0x100] sm:$0xff]
  %v58 = vld [vmem:[%s1 + $0x108] sm:$0xff]
  %v59 = vld [vmem:[%s1 + $0x110] sm:$0xff]
  %v60 = vld [vmem:[%s1 + $0x118] sm:$0xff]
  %v61 = vld [vmem:[%s1 + $0x120] sm:$0xff]
  %v62 = vld [vmem:[%s1 + $0x128] sm:$0xff]
  %v63 = vld [vmem:[%s1 + $0x130] sm:$0xff]
  %v64 = vld [vmem:[%s1 + $0x138] sm:$0xff]
  %v65 = vld [vmem:[%s1 + $0x140] sm:$0xff]
  %v66 = vld [vmem:[%s1 + $0x148] sm:$0xff]
  %v67 = vld [vmem:[%s1 + $0x150] sm:$0xff]
  %v68 = vld [vmem:[%s1 + $0x158] sm:$0xff]
  %v69 = vld [vmem:[%s1 + $0x160] sm:$0xff]
  %v70 = vld [vmem:[%s1 + $0x168] sm:$0xff]
  %v71 = vld [vmem:[%s1 + $0x170] sm:$0xff]
  %v72 = vld [vmem:[%s1 + $0x178] sm:$0xff]
  %v121 = vunpack.c.l.b16 %v25
  %v122 = vunpack.c.h.b16 %v25
  %v123 = vunpack.c.l.b16 %v26
  %v124 = vunpack.c.h.b16 %v26
  %v125 = vunpack.c.l.b16 %v27
  %v126 = vunpack.c.h.b16 %v27
  %v127 = vunpack.c.l.b16 %v28
  %v128 = vunpack.c.h.b16 %v28
  %v129 = vunpack.c.l.b16 %v29
  %v130 = vunpack.c.h.b16 %v29
  %v131 = vunpack.c.l.b16 %v30
  %v132 = vunpack.c.h.b16 %v30
  %v133 = vunpack.c.l.b16 %v31
  %v134 = vunpack.c.h.b16 %v31
  %v135 = vunpack.c.l.b16 %v32
  %v136 = vunpack.c.h.b16 %v32
  %v137 = vunpack.c.l.b16 %v33
  %v138 = vunpack.c.h.b16 %v33
  %v139 = vunpack.c.l.b16 %v34
  %v140 = vunpack.c.h.b16 %v34
  %v141 = vunpack.c.l.b16 %v35
  %v142 = vunpack.c.h.b16 %v35
  %v143 = vunpack.c.l.b16 %v36
  %v144 = vunpack.c.h.b16 %v36
  %v145 = vunpack.c.l.b16 %v37
  %v146 = vunpack.c.h.b16 %v37
  %v147 = vunpack.c.l.b16 %v38
  %v148 = vunpack.c.h.b16 %v38
  %v149 = vunpack.c.l.b16 %v39
  %v150 = vunpack.c.h.b16 %v39
  %v151 = vunpack.c.l.b16 %v40
  %v152 = vunpack.c.h.b16 %v40
  %v153 = vunpack.c.l.b16 %v41
  %v154 = vunpack.c.h.b16 %v41
  %v155 = vunpack.c.l.b16 %v42
  %v156 = vunpack.c.h.b16 %v42
  %v157 = vunpack.c.l.b16 %v43
  %v158 = vunpack.c.h.b16 %v43
  %v159 = vunpack.c.l.b16 %v44
  %v160 = vunpack.c.h.b16 %v44
  %v161 = vunpack.c.l.b16 %v45
  %v162 = vunpack.c.h.b16 %v45
  %v163 = vunpack.c.l.b16 %v46
  %v164 = vunpack.c.h.b16 %v46
  %v165 = vunpack.c.l.b16 %v47
  %v166 = vunpack.c.h.b16 %v47
  %v167 = vunpack.c.l.b16 %v48
  %v168 = vunpack.c.h.b16 %v48
  %v169 = vunpack.c.l.b16 %v49
  %v170 = vunpack.c.h.b16 %v49
  %v171 = vunpack.c.l.b16 %v50
  %v172 = vunpack.c.h.b16 %v50
  %v173 = vunpack.c.l.b16 %v51
  %v174 = vunpack.c.h.b16 %v51
  %v175 = vunpack.c.l.b16 %v52
  %v176 = vunpack.c.h.b16 %v52
  %v177 = vunpack.c.l.b16 %v53
  %v178 = vunpack.c.h.b16 %v53
  %v179 = vunpack.c.l.b16 %v54
  %v180 = vunpack.c.h.b16 %v54
  %v181 = vunpack.c.l.b16 %v55
  %v182 = vunpack.c.h.b16 %v55
  %v183 = vunpack.c.l.b16 %v56
  %v184 = vunpack.c.h.b16 %v56
  %v185 = vunpack.c.l.b16 %v57
  %v186 = vunpack.c.h.b16 %v57
  %v187 = vunpack.c.l.b16 %v58
  %v188 = vunpack.c.h.b16 %v58
  %v189 = vunpack.c.l.b16 %v59
  %v190 = vunpack.c.h.b16 %v59
  %v191 = vunpack.c.l.b16 %v60
  %v192 = vunpack.c.h.b16 %v60
  %v193 = vunpack.c.l.b16 %v61
  %v194 = vunpack.c.h.b16 %v61
  %v195 = vunpack.c.l.b16 %v62
  %v196 = vunpack.c.h.b16 %v62
  %v197 = vunpack.c.l.b16 %v63
  %v198 = vunpack.c.h.b16 %v63
  %v199 = vunpack.c.l.b16 %v64
  %v200 = vunpack.c.h.b16 %v64
  %v201 = vunpack.c.l.b16 %v65
  %v202 = vunpack.c.h.b16 %v65
  %v203 = vunpack.c.l.b16 %v66
  %v204 = vunpack.c.h.b16 %v66
  %v205 = vunpack.c.l.b16 %v67
  %v206 = vunpack.c.h.b16 %v67
  %v207 = vunpack.c.l.b16 %v68
  %v208 = vunpack.c.h.b16 %v68
  %v209 = vunpack.c.l.b16 %v69
  %v210 = vunpack.c.h.b16 %v69
  %v211 = vunpack.c.l.b16 %v70
  %v212 = vunpack.c.h.b16 %v70
  %v213 = vunpack.c.l.b16 %v71
  %v214 = vunpack.c.h.b16 %v71
  %v215 = vunpack.c.l.b16 %v72
  %v216 = vunpack.c.h.b16 %v72
  %v217 = vpack.c.b16 %v133, %v121
  %v218 = vpack.c.b16 %v134, %v122
  %v219 = vpack.c.b16 %v135, %v123
  %v220 = vpack.c.b16 %v136, %v124
  %v221 = vpack.c.b16 %v137, %v125
  %v222 = vpack.c.b16 %v138, %v126
  %v223 = vpack.c.b16 %v139, %v127
  %v224 = vpack.c.b16 %v140, %v128
  %v225 = vpack.c.b16 %v141, %v129
  %v226 = vpack.c.b16 %v142, %v130
  %v227 = vpack.c.b16 %v143, %v131
  %v228 = vpack.c.b16 %v144, %v132
  %v229 = vpack.c.b16 %v157, %v145
  %v230 = vpack.c.b16 %v158, %v146
  %v231 = vpack.c.b16 %v159, %v147
  %v232 = vpack.c.b16 %v160, %v148
  %v233 = vpack.c.b16 %v161, %v149
  %v234 = vpack.c.b16 %v162, %v150
  %v235 = vpack.c.b16 %v163, %v151
  %v236 = vpack.c.b16 %v164, %v152
  %v237 = vpack.c.b16 %v165, %v153
  %v238 = vpack.c.b16 %v166, %v154
  %v239 = vpack.c.b16 %v167, %v155
  %v240 = vpack.c.b16 %v168, %v156
  %v241 = vpack.c.b16 %v181, %v169
  %v242 = vpack.c.b16 %v182, %v170
  %v243 = vpack.c.b16 %v183, %v171
  %v244 = vpack.c.b16 %v184, %v172
  %v245 = vpack.c.b16 %v185, %v173
  %v246 = vpack.c.b16 %v186, %v174
  %v247 = vpack.c.b16 %v187, %v175
  %v248 = vpack.c.b16 %v188, %v176
  %v249 = vpack.c.b16 %v189, %v177
  %v250 = vpack.c.b16 %v190, %v178
  %v251 = vpack.c.b16 %v191, %v179
  %v252 = vpack.c.b16 %v192, %v180
  %v253 = vpack.c.b16 %v205, %v193
  %v254 = vpack.c.b16 %v206, %v194
  %v255 = vpack.c.b16 %v207, %v195
  %v256 = vpack.c.b16 %v208, %v196
  %v257 = vpack.c.b16 %v209, %v197
  %v258 = vpack.c.b16 %v210, %v198
  %v259 = vpack.c.b16 %v211, %v199
  %v260 = vpack.c.b16 %v212, %v200
  %v261 = vpack.c.b16 %v213, %v201
  %v262 = vpack.c.b16 %v214, %v202
  %v263 = vpack.c.b16 %v215, %v203
  %v264 = vpack.c.b16 %v216, %v204
  %vm313 = vcmask 523264
  %v315 = vsel %vm313, %v24, 0
  %317 = vmatprep.subr.bf16.mxu0 %v218
  %318 = vmatpush1.bf16.msra.mxu0 %v217
  %319 = vmatprep.subr.bf16.mxu0 %v230
  %320 = vmatpush1.bf16.msra.mxu0 %v229
  %321 = vmatprep.subr.bf16.mxu0 %v242
  %322 = vmatpush1.bf16.msra.mxu0 %v241
  %323 = vmatprep.subr.bf16.mxu0 %v254
  %324 = vmatpush1.bf16.msra.mxu0 %v253
  %325 = vmatprep.subr.bf16.mxu0 0
  %326 = vmatpush1.bf16.msra.mxu0 0
  %327 = vmatprep.subr.bf16.mxu0 0
  %328 = vmatpush1.bf16.msra.mxu0 0
  %329 = vmatprep.subr.bf16.mxu0 0
  %330 = vmatpush1.bf16.msra.mxu0 0
  %331 = vmatprep.subr.bf16.mxu0 0
  %332 = vmatpush1.bf16.msra.mxu0 0
  %333 = vmatprep.subr.bf16.mxu0 0
  %334 = vmatpush1.bf16.msra.mxu0 0
  %335 = vmatprep.subr.bf16.mxu0 0
  %336 = vmatpush1.bf16.msra.mxu0 0
  %337 = vmatprep.subr.bf16.mxu0 0
  %338 = vmatpush1.bf16.msra.mxu0 0
  %339 = vmatprep.subr.bf16.mxu0 0
  %340 = vmatpush1.bf16.msra.mxu0 0
  %341 = vmatprep.subr.bf16.mxu0 0
  %342 = vmatpush1.bf16.msra.mxu0 0
  %343 = vmatprep.subr.bf16.mxu0 0
  %344 = vmatpush1.bf16.msra.mxu0 0
  %345 = vmatprep.subr.bf16.mxu0 0
  %346 = vmatpush1.bf16.msra.mxu0 0
  %347 = vmatprep.subr.bf16.mxu0 0
  %348 = vmatpush1.bf16.msra.mxu0 0
  %349 = vmatprep.mubr.bf16.mxu0 0
  %350 = vmatmul.mubr.bf16.gmra.mrb[0].mxu0 %v315
  %v351 = vpop.f32.mrb[0].mxu0
  %v352 = vadd.f32 0.0, %v351
  %v353 = vpop.f32.mrb[0].mxu0
  %v354 = vadd.f32 0.0, %v353
  %v355 = vpop.f32.mrb[0].mxu0
  %v356 = vpop.f32.mrb[0].mxu0
  %357 = vdwg.mxu0
  %358 = vmatprep.subr.bf16.mxu0 %v220
  %359 = vmatpush1.bf16.msra.mxu0 %v219
  %360 = vmatprep.subr.bf16.mxu0 %v232
  %361 = vmatpush1.bf16.msra.mxu0 %v231
  %362 = vmatprep.subr.bf16.mxu0 %v244
  %363 = vmatpush1.bf16.msra.mxu0 %v243
  %364 = vmatprep.subr.bf16.mxu0 %v256
  %365 = vmatpush1.bf16.msra.mxu0 %v255
  %366 = vmatprep.subr.bf16.mxu0 0
  %367 = vmatpush1.bf16.msra.mxu0 0
  %368 = vmatprep.subr.bf16.mxu0 0
  %369 = vmatpush1.bf16.msra.mxu0 0
  %370 = vmatprep.subr.bf16.mxu0 0
  %371 = vmatpush1.bf16.msra.mxu0 0
  %372 = vmatprep.subr.bf16.mxu0 0
  %373 = vmatpush1.bf16.msra.mxu0 0
  %374 = vmatprep.subr.bf16.mxu0 0
  %375 = vmatpush1.bf16.msra.mxu0 0
  %376 = vmatprep.subr.bf16.mxu0 0
  %377 = vmatpush1.bf16.msra.mxu0 0
  %378 = vmatprep.subr.bf16.mxu0 0
  %379 = vmatpush1.bf16.msra.mxu0 0
  %380 = vmatprep.subr.bf16.mxu0 0
  %381 = vmatpush1.bf16.msra.mxu0 0
  %382 = vmatprep.subr.bf16.mxu0 0
  %383 = vmatpush1.bf16.msra.mxu0 0
  %384 = vmatprep.subr.bf16.mxu0 0
  %385 = vmatpush1.bf16.msra.mxu0 0
  %386 = vmatprep.subr.bf16.mxu0 0
  %387 = vmatpush1.bf16.msra.mxu0 0
  %388 = vmatprep.subr.bf16.mxu0 0
  %389 = vmatpush1.bf16.msra.mxu0 0
  %390 = vmatprep.mubr.bf16.mxu0 0
  %391 = vmatmul.mubr.bf16.gmra.mrb[0].mxu0 %v315
  %v392 = vpop.f32.mrb[0].mxu0
  %v393 = vadd.f32 0.0, %v392
  %v394 = vpop.f32.mrb[0].mxu0
  %v395 = vadd.f32 0.0, %v394
  %v396 = vpop.f32.mrb[0].mxu0
  %v397 = vpop.f32.mrb[0].mxu0
  %398 = vdwg.mxu0
  %399 = vmatprep.subr.bf16.mxu0 %v222
  %400 = vmatpush1.bf16.msra.mxu0 %v221
  %401 = vmatprep.subr.bf16.mxu0 %v234
  %402 = vmatpush1.bf16.msra.mxu0 %v233
  %403 = vmatprep.subr.bf16.mxu0 %v246
  %404 = vmatpush1.bf16.msra.mxu0 %v245
  %405 = vmatprep.subr.bf16.mxu0 %v258
  %406 = vmatpush1.bf16.msra.mxu0 %v257
  %407 = vmatprep.subr.bf16.mxu0 0
  %408 = vmatpush1.bf16.msra.mxu0 0
  %409 = vmatprep.subr.bf16.mxu0 0
  %410 = vmatpush1.bf16.msra.mxu0 0
  %411 = vmatprep.subr.bf16.mxu0 0
  %412 = vmatpush1.bf16.msra.mxu0 0
  %413 = vmatprep.subr.bf16.mxu0 0
  %414 = vmatpush1.bf16.msra.mxu0 0
  %415 = vmatprep.subr.bf16.mxu0 0
  %416 = vmatpush1.bf16.msra.mxu0 0
  %417 = vmatprep.subr.bf16.mxu0 0
  %418 = vmatpush1.bf16.msra.mxu0 0
  %419 = vmatprep.subr.bf16.mxu0 0
  %420 = vmatpush1.bf16.msra.mxu0 0
  %421 = vmatprep.subr.bf16.mxu0 0
  %422 = vmatpush1.bf16.msra.mxu0 0
  %423 = vmatprep.subr.bf16.mxu0 0
  %424 = vmatpush1.bf16.msra.mxu0 0
  %425 = vmatprep.subr.bf16.mxu0 0
  %426 = vmatpush1.bf16.msra.mxu0 0
  %427 = vmatprep.subr.bf16.mxu0 0
  %428 = vmatpush1.bf16.msra.mxu0 0
  %429 = vmatprep.subr.bf16.mxu0 0
  %430 = vmatpush1.bf16.msra.mxu0 0
  %431 = vmatprep.mubr.bf16.mxu0 0
  %432 = vmatmul.mubr.bf16.gmra.mrb[0].mxu0 %v315
  %v433 = vpop.f32.mrb[0].mxu0
  %v434 = vadd.f32 0.0, %v433
  %v435 = vpop.f32.mrb[0].mxu0
  %v436 = vadd.f32 0.0, %v435
  %v437 = vpop.f32.mrb[0].mxu0
  %v438 = vpop.f32.mrb[0].mxu0
  %439 = vdwg.mxu0
  %440 = vmatprep.subr.bf16.mxu0 %v224
  %441 = vmatpush1.bf16.msra.mxu0 %v223
  %442 = vmatprep.subr.bf16.mxu0 %v236
  %443 = vmatpush1.bf16.msra.mxu0 %v235
  %444 = vmatprep.subr.bf16.mxu0 %v248
  %445 = vmatpush1.bf16.msra.mxu0 %v247
  %446 = vmatprep.subr.bf16.mxu0 %v260
  %447 = vmatpush1.bf16.msra.mxu0 %v259
  %448 = vmatprep.subr.bf16.mxu0 0
  %449 = vmatpush1.bf16.msra.mxu0 0
  %450 = vmatprep.subr.bf16.mxu0 0
  %451 = vmatpush1.bf16.msra.mxu0 0
  %452 = vmatprep.subr.bf16.mxu0 0
  %453 = vmatpush1.bf16.msra.mxu0 0
  %454 = vmatprep.subr.bf16.mxu0 0
  %455 = vmatpush1.bf16.msra.mxu0 0
  %456 = vmatprep.subr.bf16.mxu0 0
  %457 = vmatpush1.bf16.msra.mxu0 0
  %458 = vmatprep.subr.bf16.mxu0 0
  %459 = vmatpush1.bf16.msra.mxu0 0
  %460 = vmatprep.subr.bf16.mxu0 0
  %461 = vmatpush1.bf16.msra.mxu0 0
  %462 = vmatprep.subr.bf16.mxu0 0
  %463 = vmatpush1.bf16.msra.mxu0 0
  %464 = vmatprep.subr.bf16.mxu0 0
  %465 = vmatpush1.bf16.msra.mxu0 0
  %466 = vmatprep.subr.bf16.mxu0 0
  %467 = vmatpush1.bf16.msra.mxu0 0
  %468 = vmatprep.subr.bf16.mxu0 0
  %469 = vmatpush1.bf16.msra.mxu0 0
  %470 = vmatprep.subr.bf16.mxu0 0
  %471 = vmatpush1.bf16.msra.mxu0 0
  %472 = vmatprep.mubr.bf16.mxu0 0
  %473 = vmatmul.mubr.bf16.gmra.mrb[0].mxu0 %v315
  %v474 = vpop.f32.mrb[0].mxu0
  %v475 = vadd.f32 0.0, %v474
  %v476 = vpop.f32.mrb[0].mxu0
  %v477 = vadd.f32 0.0, %v476
  %v478 = vpop.f32.mrb[0].mxu0
  %v479 = vpop.f32.mrb[0].mxu0
  %480 = vdwg.mxu0
  %481 = vmatprep.subr.bf16.mxu0 %v226
  %482 = vmatpush1.bf16.msra.mxu0 %v225
  %483 = vmatprep.subr.bf16.mxu0 %v238
  %484 = vmatpush1.bf16.msra.mxu0 %v237
  %485 = vmatprep.subr.bf16.mxu0 %v250
  %486 = vmatpush1.bf16.msra.mxu0 %v249
  %487 = vmatprep.subr.bf16.mxu0 %v262
  %488 = vmatpush1.bf16.msra.mxu0 %v261
  %489 = vmatprep.subr.bf16.mxu0 0
  %490 = vmatpush1.bf16.msra.mxu0 0
  %491 = vmatprep.subr.bf16.mxu0 0
  %492 = vmatpush1.bf16.msra.mxu0 0
  %493 = vmatprep.subr.bf16.mxu0 0
  %494 = vmatpush1.bf16.msra.mxu0 0
  %495 = vmatprep.subr.bf16.mxu0 0
  %496 = vmatpush1.bf16.msra.mxu0 0
  %497 = vmatprep.subr.bf16.mxu0 0
  %498 = vmatpush1.bf16.msra.mxu0 0
  %499 = vmatprep.subr.bf16.mxu0 0
  %500 = vmatpush1.bf16.msra.mxu0 0
  %501 = vmatprep.subr.bf16.mxu0 0
  %502 = vmatpush1.bf16.msra.mxu0 0
  %503 = vmatprep.subr.bf16.mxu0 0
  %504 = vmatpush1.bf16.msra.mxu0 0
  %505 = vmatprep.subr.bf16.mxu0 0
  %506 = vmatpush1.bf16.msra.mxu0 0
  %507 = vmatprep.subr.bf16.mxu0 0
  %508 = vmatpush1.bf16.msra.mxu0 0
  %509 = vmatprep.subr.bf16.mxu0 0
  %510 = vmatpush1.bf16.msra.mxu0 0
  %511 = vmatprep.subr.bf16.mxu0 0
  %512 = vmatpush1.bf16.msra.mxu0 0
  %513 = vmatprep.mubr.bf16.mxu0 0
  %514 = vmatmul.mubr.bf16.gmra.mrb[0].mxu0 %v315
  %v515 = vpop.f32.mrb[0].mxu0
  %v516 = vadd.f32 0.0, %v515
  %v517 = vpop.f32.mrb[0].mxu0
  %v518 = vadd.f32 0.0, %v517
  %v519 = vpop.f32.mrb[0].mxu0
  %v520 = vpop.f32.mrb[0].mxu0
  %521 = vdwg.mxu0
  %522 = vmatprep.subr.bf16.mxu0 %v228
  %523 = vmatpush1.bf16.msra.mxu0 %v227
  %524 = vmatprep.subr.bf16.mxu0 %v240
  %525 = vmatpush1.bf16.msra.mxu0 %v239
  %526 = vmatprep.subr.bf16.mxu0 %v252
  %527 = vmatpush1.bf16.msra.mxu0 %v251
  %528 = vmatprep.subr.bf16.mxu0 %v264
  %529 = vmatpush1.bf16.msra.mxu0 %v263
  %530 = vmatprep.subr.bf16.mxu0 0
  %531 = vmatpush1.bf16.msra.mxu0 0
  %532 = vmatprep.subr.bf16.mxu0 0
  %533 = vmatpush1.bf16.msra.mxu0 0
  %534 = vmatprep.subr.bf16.mxu0 0
  %535 = vmatpush1.bf16.msra.mxu0 0
  %536 = vmatprep.subr.bf16.mxu0 0
  %537 = vmatpush1.bf16.msra.mxu0 0
  %538 = vmatprep.subr.bf16.mxu0 0
  %539 = vmatpush1.bf16.msra.mxu0 0
  %540 = vmatprep.subr.bf16.mxu0 0
  %541 = vmatpush1.bf16.msra.mxu0 0
  %542 = vmatprep.subr.bf16.mxu0 0
  %543 = vmatpush1.bf16.msra.mxu0 0
  %544 = vmatprep.subr.bf16.mxu0 0
  %545 = vmatpush1.bf16.msra.mxu0 0
  %546 = vmatprep.subr.bf16.mxu0 0
  %547 = vmatpush1.bf16.msra.mxu0 0
  %548 = vmatprep.subr.bf16.mxu0 0
  %549 = vmatpush1.bf16.msra.mxu0 0
  %550 = vmatprep.subr.bf16.mxu0 0
  %551 = vmatpush1.bf16.msra.mxu0 0
  %552 = vmatprep.subr.bf16.mxu0 0
  %553 = vmatpush1.bf16.msra.mxu0 0
  %554 = vmatprep.mubr.bf16.mxu0 0
  %555 = vmatmul.mubr.bf16.gmra.mrb[0].mxu0 %v315
  %v556 = vpop.f32.mrb[0].mxu0
  %v557 = vadd.f32 0.0, %v556
  %v558 = vpop.f32.mrb[0].mxu0
  %v559 = vadd.f32 0.0, %v558
  %v560 = vpop.f32.mrb[0].mxu0
  %v561 = vpop.f32.mrb[0].mxu0
  %562 = vdwg.mxu0
  %v563 = vld [vmem:[%s3] sm:$0xff]
  %v564 = vld [vmem:[%s3 + $0x8] sm:$0xff]
  %v565 = vld [vmem:[%s3 + $0x10] sm:$0xff]
  %v566 = vld [vmem:[%s3 + $0x18] sm:$0xff]
  %v567 = vld [vmem:[%s2] sm:$0xff]
  %v568 = vld [vmem:[%s2 + $0x8] sm:$0xff]
  %v569 = vld [vmem:[%s2 + $0x10] sm:$0xff]
  %v570 = vld [vmem:[%s2 + $0x18] sm:$0xff]
  %vm571 = vcmask 64512
  %v573 = vsel %vm571, %v563, 0
  %v576 = vsel %vm571, %v564, 0
  %v579 = vsel %vm571, %v565, 0
  %v582 = vsel %vm571, %v566, 0
  %584 = vmatprep.subr.mxu0 %v568
  %585 = vmatpush1.msra.mxu0 %v567
  %586 = vmatprep.subr.mxu0 0.0
  %587 = vmatpush1.msra.mxu0 0.0
  %588 = vmatprep.subr.mxu0 0.0
  %589 = vmatpush1.msra.mxu0 0.0
  %590 = vmatprep.subr.mxu0 0.0
  %591 = vmatpush1.msra.mxu0 0.0
  %592 = vmatprep.subr.mxu0 0.0
  %593 = vmatpush1.msra.mxu0 0.0
  %594 = vmatprep.subr.mxu0 0.0
  %595 = vmatpush1.msra.mxu0 0.0
  %596 = vmatprep.subr.mxu0 0.0
  %597 = vmatpush1.msra.mxu0 0.0
  %598 = vmatprep.subr.mxu0 0.0
  %599 = vmatpush1.msra.mxu0 0.0
  %600 = vmatprep.subr.mxu0 0.0
  %601 = vmatpush1.msra.mxu0 0.0
  %602 = vmatprep.subr.mxu0 0.0
  %603 = vmatpush1.msra.mxu0 0.0
  %604 = vmatprep.subr.mxu0 0.0
  %605 = vmatpush1.msra.mxu0 0.0
  %606 = vmatprep.subr.mxu0 0.0
  %607 = vmatpush1.msra.mxu0 0.0
  %608 = vmatprep.subr.mxu0 0.0
  %609 = vmatpush1.msra.mxu0 0.0
  %610 = vmatprep.subr.mxu0 0.0
  %611 = vmatpush1.msra.mxu0 0.0
  %612 = vmatprep.subr.mxu0 0.0
  %613 = vmatpush1.msra.mxu0 0.0
  %614 = vmatprep.subr.mxu0 0.0
  %615 = vmatpush1.msra.mxu0 0.0
  %616 = vmatprep.subr.mxu0 0.0
  %617 = vmatpush1.msra.mxu0 0.0
  %618 = vmatprep.subr.mxu0 0.0
  %619 = vmatpush1.msra.mxu0 0.0
  %620 = vmatprep.subr.mxu0 0.0
  %621 = vmatpush1.msra.mxu0 0.0
  %622 = vmatprep.subr.mxu0 0.0
  %623 = vmatpush1.msra.mxu0 0.0
  %624 = vmatprep.subr.mxu0 0.0
  %625 = vmatpush1.msra.mxu0 0.0
  %626 = vmatprep.subr.mxu0 0.0
  %627 = vmatpush1.msra.mxu0 0.0
  %628 = vmatprep.subr.mxu0 0.0
  %629 = vmatpush1.msra.mxu0 0.0
  %630 = vmatprep.subr.mxu0 0.0
  %631 = vmatpush1.msra.mxu0 0.0
  %632 = vmatprep.subr.mxu0 0.0
  %633 = vmatpush1.msra.mxu0 0.0
  %634 = vmatprep.subr.mxu0 0.0
  %635 = vmatpush1.msra.mxu0 0.0
  %636 = vmatprep.subr.mxu0 0.0
  %637 = vmatpush1.msra.mxu0 0.0
  %638 = vmatprep.subr.mxu0 0.0
  %639 = vmatpush1.msra.mxu0 0.0
  %640 = vmatprep.subr.mxu0 0.0
  %641 = vmatpush1.msra.mxu0 0.0
  %642 = vmatprep.subr.mxu0 0.0
  %643 = vmatpush1.msra.mxu0 0.0
  %644 = vmatprep.subr.mxu0 0.0
  %645 = vmatpush1.msra.mxu0 0.0
  %646 = vmatprep.subr.mxu0 0.0
  %647 = vmatpush1.msra.mxu0 0.0
  %648 = vmatprep.mubr.f32.mxu0 0.0
  %649 = vmatmul.mubr.f32.gmra.mrb[0].mxu0 %v573
  %v650 = vpop.f32.mrb[0].mxu0
  %v651 = vadd.f32 0.0, %v650
  %v652 = vpop.f32.mrb[0].mxu0
  %v653 = vadd.f32 0.0, %v652
  %654 = vmatprep.mubr.f32.mxu0 0.0
  %655 = vmatmul.mubr.f32.gmra.mrb[0].mxu0 %v576
  %v656 = vpop.f32.mrb[0].mxu0
  %v657 = vadd.f32 0.0, %v656
  %v658 = vpop.f32.mrb[0].mxu0
  %v659 = vadd.f32 0.0, %v658
  %660 = vmatprep.mubr.f32.mxu0 0.0
  %661 = vmatmul.mubr.f32.gmra.mrb[0].mxu0 %v579
  %v662 = vpop.f32.mrb[0].mxu0
  %v663 = vadd.f32 0.0, %v662
  %v664 = vpop.f32.mrb[0].mxu0
  %v665 = vadd.f32 0.0, %v664
  %666 = vmatprep.mubr.f32.mxu0 0.0
  %667 = vmatmul.mubr.f32.gmra.mrb[0].mxu0 %v582
  %v668 = vpop.f32.mrb[0].mxu0
  %v669 = vadd.f32 0.0, %v668
  %v670 = vpop.f32.mrb[0].mxu0
  %v671 = vadd.f32 0.0, %v670
  %672 = vdwg.mxu0
  %673 = vmatprep.subr.mxu0 %v570
  %674 = vmatpush1.msra.mxu0 %v569
  %675 = vmatprep.subr.mxu0 0.0
  %676 = vmatpush1.msra.mxu0 0.0
  %677 = vmatprep.subr.mxu0 0.0
  %678 = vmatpush1.msra.mxu0 0.0
  %679 = vmatprep.subr.mxu0 0.0
  %680 = vmatpush1.msra.mxu0 0.0
  %681 = vmatprep.subr.mxu0 0.0
  %682 = vmatpush1.msra.mxu0 0.0
  %683 = vmatprep.subr.mxu0 0.0
  %684 = vmatpush1.msra.mxu0 0.0
  %685 = vmatprep.subr.mxu0 0.0
  %686 = vmatpush1.msra.mxu0 0.0
  %687 = vmatprep.subr.mxu0 0.0
  %688 = vmatpush1.msra.mxu0 0.0
  %689 = vmatprep.subr.mxu0 0.0
  %690 = vmatpush1.msra.mxu0 0.0
  %691 = vmatprep.subr.mxu0 0.0
  %692 = vmatpush1.msra.mxu0 0.0
  %693 = vmatprep.subr.mxu0 0.0
  %694 = vmatpush1.msra.mxu0 0.0
  %695 = vmatprep.subr.mxu0 0.0
  %696 = vmatpush1.msra.mxu0 0.0
  %697 = vmatprep.subr.mxu0 0.0
  %698 = vmatpush1.msra.mxu0 0.0
  %699 = vmatprep.subr.mxu0 0.0
  %700 = vmatpush1.msra.mxu0 0.0
  %701 = vmatprep.subr.mxu0 0.0
  %702 = vmatpush1.msra.mxu0 0.0
  %703 = vmatprep.subr.mxu0 0.0
  %704 = vmatpush1.msra.mxu0 0.0
  %705 = vmatprep.subr.mxu0 0.0
  %706 = vmatpush1.msra.mxu0 0.0
  %707 = vmatprep.subr.mxu0 0.0
  %708 = vmatpush1.msra.mxu0 0.0
  %709 = vmatprep.subr.mxu0 0.0
  %710 = vmatpush1.msra.mxu0 0.0
  %711 = vmatprep.subr.mxu0 0.0
  %712 = vmatpush1.msra.mxu0 0.0
  %713 = vmatprep.subr.mxu0 0.0
  %714 = vmatpush1.msra.mxu0 0.0
  %715 = vmatprep.subr.mxu0 0.0
  %716 = vmatpush1.msra.mxu0 0.0
  %717 = vmatprep.subr.mxu0 0.0
  %718 = vmatpush1.msra.mxu0 0.0
  %719 = vmatprep.subr.mxu0 0.0
  %720 = vmatpush1.msra.mxu0 0.0
  %721 = vmatprep.subr.mxu0 0.0
  %722 = vmatpush1.msra.mxu0 0.0
  %723 = vmatprep.subr.mxu0 0.0
  %724 = vmatpush1.msra.mxu0 0.0
  %725 = vmatprep.subr.mxu0 0.0
  %726 = vmatpush1.msra.mxu0 0.0
  %727 = vmatprep.subr.mxu0 0.0
  %728 = vmatpush1.msra.mxu0 0.0
  %729 = vmatprep.subr.mxu0 0.0
  %730 = vmatpush1.msra.mxu0 0.0
  %731 = vmatprep.subr.mxu0 0.0
  %732 = vmatpush1.msra.mxu0 0.0
  %733 = vmatprep.subr.mxu0 0.0
  %734 = vmatpush1.msra.mxu0 0.0
  %735 = vmatprep.subr.mxu0 0.0
  %736 = vmatpush1.msra.mxu0 0.0
  %737 = vmatprep.mubr.f32.mxu0 0.0
  %738 = vmatmul.mubr.f32.gmra.mrb[0].mxu0 %v573
  %v739 = vpop.f32.mrb[0].mxu0
  %v740 = vadd.f32 0.0, %v739
  %v741 = vpop.f32.mrb[0].mxu0
  %v742 = vadd.f32 0.0, %v741
  %743 = vmatprep.mubr.f32.mxu0 0.0
  %744 = vmatmul.mubr.f32.gmra.mrb[0].mxu0 %v576
  %v745 = vpop.f32.mrb[0].mxu0
  %v746 = vadd.f32 0.0, %v745
  %v747 = vpop.f32.mrb[0].mxu0
  %v748 = vadd.f32 0.0, %v747
  %749 = vmatprep.mubr.f32.mxu0 0.0
  %750 = vmatmul.mubr.f32.gmra.mrb[0].mxu0 %v579
  %v751 = vpop.f32.mrb[0].mxu0
  %v752 = vadd.f32 0.0, %v751
  %v753 = vpop.f32.mrb[0].mxu0
  %v754 = vadd.f32 0.0, %v753
  %755 = vmatprep.mubr.f32.mxu0 0.0
  %756 = vmatmul.mubr.f32.gmra.mrb[0].mxu0 %v582
  %v757 = vpop.f32.mrb[0].mxu0
  %v758 = vadd.f32 0.0, %v757
  %v759 = vpop.f32.mrb[0].mxu0
  %v760 = vadd.f32 0.0, %v759
  %761 = vdwg.mxu0
  %v762 = vld [vmem:[%s4] sm:$0xff]
  %v763 = vld [vmem:[%s4 + $0x8] sm:$0xff]
  %v764 = vld [vmem:[%s4 + $0x10] sm:$0xff]
  %v765 = vld [vmem:[%s4 + $0x18] sm:$0xff]
  %v766 = vld [vmem:[%s4 + $0x20] sm:$0xff]
  %v767 = vld [vmem:[%s4 + $0x28] sm:$0xff]
  %v768 = vld [vmem:[%s4 + $0x30] sm:$0xff]
  %v769 = vld [vmem:[%s4 + $0x38] sm:$0xff]
  %v770 = vld [vmem:[%s4 + $0x40] sm:$0xff]
  %v771 = vld [vmem:[%s4 + $0x48] sm:$0xff]
  %v772 = vld [vmem:[%s4 + $0x50] sm:$0xff]
  %v773 = vld [vmem:[%s4 + $0x58] sm:$0xff]
  %v774 = vld [vmem:[%s4 + $0x60] sm:$0xff]
  %v775 = vld [vmem:[%s4 + $0x68] sm:$0xff]
  %v776 = vld [vmem:[%s4 + $0x70] sm:$0xff]
  %v777 = vld [vmem:[%s4 + $0x78] sm:$0xff]
  %v778 = vld [vmem:[%s4 + $0x80] sm:$0xff]
  %v779 = vld [vmem:[%s4 + $0x88] sm:$0xff]
  %v780 = vld [vmem:[%s4 + $0x90] sm:$0xff]
  %v781 = vld [vmem:[%s4 + $0x98] sm:$0xff]
  %v782 = vld [vmem:[%s4 + $0xa0] sm:$0xff]
  %v783 = vld [vmem:[%s4 + $0xa8] sm:$0xff]
  %v784 = vld [vmem:[%s4 + $0xb0] sm:$0xff]
  %v785 = vld [vmem:[%s4 + $0xb8] sm:$0xff]
  %v786 = vld [vmem:[%s4 + $0xc0] sm:$0xff]
  %v787 = vld [vmem:[%s4 + $0xc8] sm:$0xff]
  %v788 = vld [vmem:[%s4 + $0xd0] sm:$0xff]
  %v789 = vld [vmem:[%s4 + $0xd8] sm:$0xff]
  %v790 = vld [vmem:[%s4 + $0xe0] sm:$0xff]
  %v791 = vld [vmem:[%s4 + $0xe8] sm:$0xff]
  %v792 = vld [vmem:[%s4 + $0xf0] sm:$0xff]
  %v793 = vld [vmem:[%s4 + $0xf8] sm:$0xff]
  %v794 = vld [vmem:[%s4 + $0x100] sm:$0xff]
  %v795 = vld [vmem:[%s4 + $0x108] sm:$0xff]
  %v796 = vld [vmem:[%s4 + $0x110] sm:$0xff]
  %v797 = vld [vmem:[%s4 + $0x118] sm:$0xff]
  %v798 = vld [vmem:[%s4 + $0x120] sm:$0xff]
  %v799 = vld [vmem:[%s4 + $0x128] sm:$0xff]
  %v800 = vld [vmem:[%s4 + $0x130] sm:$0xff]
  %v801 = vld [vmem:[%s4 + $0x138] sm:$0xff]
  %v802 = vld [vmem:[%s4 + $0x140] sm:$0xff]
  %v803 = vld [vmem:[%s4 + $0x148] sm:$0xff]
  %v804 = vld [vmem:[%s4 + $0x150] sm:$0xff]
  %v805 = vld [vmem:[%s4 + $0x158] sm:$0xff]
  %v806 = vld [vmem:[%s4 + $0x160] sm:$0xff]
  %v807 = vld [vmem:[%s4 + $0x168] sm:$0xff]
  %v808 = vld [vmem:[%s4 + $0x170] sm:$0xff]
  %v809 = vld [vmem:[%s4 + $0x178] sm:$0xff]
  %v810 = vld [vmem:[%s4 + $0x180] sm:$0xff]
  %v811 = vld [vmem:[%s4 + $0x188] sm:$0xff]
  %v812 = vld [vmem:[%s4 + $0x190] sm:$0xff]
  %v813 = vld [vmem:[%s4 + $0x198] sm:$0xff]
  %v814 = vld [vmem:[%s4 + $0x1a0] sm:$0xff]
  %v815 = vld [vmem:[%s4 + $0x1a8] sm:$0xff]
  %v816 = vld [vmem:[%s4 + $0x1b0] sm:$0xff]
  %v817 = vld [vmem:[%s4 + $0x1b8] sm:$0xff]
  %v818 = vld [vmem:[%s4 + $0x1c0] sm:$0xff]
  %v819 = vld [vmem:[%s4 + $0x1c8] sm:$0xff]
  %v820 = vld [vmem:[%s4 + $0x1d0] sm:$0xff]
  %v821 = vld [vmem:[%s4 + $0x1d8] sm:$0xff]
  %v822 = vld [vmem:[%s4 + $0x1e0] sm:$0xff]
  %v823 = vld [vmem:[%s4 + $0x1e8] sm:$0xff]
  %v824 = vld [vmem:[%s4 + $0x1f0] sm:$0xff]
  %v825 = vld [vmem:[%s4 + $0x1f8] sm:$0xff]
  %v826 = vmul.f32 %v651, %v352
  %v827 = vmul.f32 %v653, %v354
  %v828 = vmul.f32 %v740, %v393
  %v829 = vmul.f32 %v742, %v395
  %v834 = vrot.slane %v434, 7
  %v835 = vrot.slane %v436, 7
  %v836 = vrot.slane %v475, 7
  %v837 = vrot.slane %v477, 7
  %v842 = vmul.f32 %v651, %v834
  %v843 = vmul.f32 %v653, %v835
  %v844 = vmul.f32 %v740, %v836
  %v845 = vmul.f32 %v742, %v837
  %v850 = vrot.slane %v842, 1
  %v851 = vrot.slane %v843, 1
  %v852 = vrot.slane %v844, 1
  %v853 = vrot.slane %v845, 1
  %v858 = vadd.f32 %v826, %v850
  %v859 = vadd.f32 %v827, %v851
  %v860 = vadd.f32 %v828, %v852
  %v861 = vadd.f32 %v829, %v853
  %v866 = vrot.slane %v516, 6
  %v867 = vrot.slane %v518, 6
  %v868 = vrot.slane %v557, 6
  %v869 = vrot.slane %v559, 6
  %v874 = vmul.f32 %v651, %v866
  %v875 = vmul.f32 %v653, %v867
  %v876 = vmul.f32 %v740, %v868
  %v877 = vmul.f32 %v742, %v869
  %v882 = vrot.slane %v874, 2
  %v883 = vrot.slane %v875, 2
  %v884 = vrot.slane %v876, 2
  %v885 = vrot.slane %v877, 2
  %v890 = vadd.f32 %v858, %v882
  %v891 = vadd.f32 %v859, %v883
  %v892 = vadd.f32 %v860, %v884
  %v893 = vadd.f32 %v861, %v885
  %v898 = vrot.slane %v651, 3
  %v899 = vrot.slane %v653, 3
  %v900 = vrot.slane %v740, 3
  %v901 = vrot.slane %v742, 3
  %v906 = vadd.f32 %v890, %v898
  %v907 = vadd.f32 %v891, %v899
  %v908 = vadd.f32 %v892, %v900
  %v909 = vadd.f32 %v893, %v901
  %v914 = vrot.slane %v352, 4
  %v915 = vrot.slane %v354, 4
  %v916 = vrot.slane %v393, 4
  %v917 = vrot.slane %v395, 4
  %v922 = vmul.f32 %v651, %v914
  %v923 = vmul.f32 %v653, %v915
  %v924 = vmul.f32 %v740, %v916
  %v925 = vmul.f32 %v742, %v917
  %v926 = vrot.slane %v434, 3
  %v927 = vrot.slane %v436, 3
  %v928 = vrot.slane %v475, 3
  %v929 = vrot.slane %v477, 3
  %v934 = vmul.f32 %v651, %v926
  %v935 = vmul.f32 %v653, %v927
  %v936 = vmul.f32 %v740, %v928
  %v937 = vmul.f32 %v742, %v929
  %v942 = vrot.slane %v934, 1
  %v943 = vrot.slane %v935, 1
  %v944 = vrot.slane %v936, 1
  %v945 = vrot.slane %v937, 1
  %v950 = vadd.f32 %v922, %v942
  %v951 = vadd.f32 %v923, %v943
  %v952 = vadd.f32 %v924, %v944
  %v953 = vadd.f32 %v925, %v945
  %v954 = vrot.slane %v516, 2
  %v955 = vrot.slane %v518, 2
  %v956 = vrot.slane %v557, 2
  %v957 = vrot.slane %v559, 2
  %v962 = vmul.f32 %v651, %v954
  %v963 = vmul.f32 %v653, %v955
  %v964 = vmul.f32 %v740, %v956
  %v965 = vmul.f32 %v742, %v957
  %v970 = vrot.slane %v962, 2
  %v971 = vrot.slane %v963, 2
  %v972 = vrot.slane %v964, 2
  %v973 = vrot.slane %v965, 2
  %v978 = vadd.f32 %v950, %v970
  %v979 = vadd.f32 %v951, %v971
  %v980 = vadd.f32 %v952, %v972
  %v981 = vadd.f32 %v953, %v973
  %v982 = vadd.f32 %v978, %v898
  %v983 = vadd.f32 %v979, %v899
  %v984 = vadd.f32 %v980, %v900
  %v985 = vadd.f32 %v981, %v901
  %v986 = vmul.f32 %v657, %v352
  %v987 = vmul.f32 %v659, %v354
  %v988 = vmul.f32 %v746, %v393
  %v989 = vmul.f32 %v748, %v395
  %v990 = vmul.f32 %v657, %v834
  %v991 = vmul.f32 %v659, %v835
  %v992 = vmul.f32 %v746, %v836
  %v993 = vmul.f32 %v748, %v837
  %v998 = vrot.slane %v990, 1
  %v999 = vrot.slane %v991, 1
  %v1000 = vrot.slane %v992, 1
  %v1001 = vrot.slane %v993, 1
  %v1006 = vadd.f32 %v986, %v998
  %v1007 = vadd.f32 %v987, %v999
  %v1008 = vadd.f32 %v988, %v1000
  %v1009 = vadd.f32 %v989, %v1001
  %v1010 = vmul.f32 %v657, %v866
  %v1011 = vmul.f32 %v659, %v867
  %v1012 = vmul.f32 %v746, %v868
  %v1013 = vmul.f32 %v748, %v869
  %v1018 = vrot.slane %v1010, 2
  %v1019 = vrot.slane %v1011, 2
  %v1020 = vrot.slane %v1012, 2
  %v1021 = vrot.slane %v1013, 2
  %v1026 = vadd.f32 %v1006, %v1018
  %v1027 = vadd.f32 %v1007, %v1019
  %v1028 = vadd.f32 %v1008, %v1020
  %v1029 = vadd.f32 %v1009, %v1021
  %v1034 = vrot.slane %v657, 3
  %v1035 = vrot.slane %v659, 3
  %v1036 = vrot.slane %v746, 3
  %v1037 = vrot.slane %v748, 3
  %v1042 = vadd.f32 %v1026, %v1034
  %v1043 = vadd.f32 %v1027, %v1035
  %v1044 = vadd.f32 %v1028, %v1036
  %v1045 = vadd.f32 %v1029, %v1037
  %v1050 = vcombine.low %v906, %v907
  %v1051 = vcombine.low %v908, %v909
  %v1053 = vunpack.c.l.s4 1966171168
  %v1054 = vunpack.c.0.s8 %v1053
  %v1055 = vlaneseq
  %v1056 = vshrl.u32 %v1055, 7
  %v1057 = vsub.s32 %v1054, %v1056
  %v1058 = vrot.slane %v1050, %v1057
  %v1060 = vunpack.c.l.s4 1966171168
  %v1061 = vunpack.c.0.s8 %v1060
  %v1062 = vlaneseq
  %v1063 = vshrl.u32 %v1062, 7
  %v1064 = vsub.s32 %v1061, %v1063
  %v1065 = vrot.slane %v1051, %v1064
  %v1066 = vcombine.low %v1058, %v1065
  %v1068 = vunpack.c.l.s4 1966171168
  %v1069 = vunpack.c.0.s8 %v1068
  %v1070 = vlaneseq
  %v1071 = vshrl.u32 %v1070, 7
  %v1072 = vsub.s32 %v1069, %v1071
  %v1073 = vrot.slane %v1066, %v1072
  %v1075 = vlaneseq
  %vm1076 = vcmp.ge.s32.totalorder %v1075, 0
  %vm1077 = vcmp.lt.s32.totalorder %v1075, 512
  %vm1078 = vmand %vm1076, %vm1077
  %1079 = vst.msk [vmem:[%s5] ss:$8 sm:$0xf] %vm1078, %v1073
  %1080 = vst.msk [vmem:[%s5] ss:$8 sm:$0x0] %vm1078, %v1073
  %v1085 = vcombine.high %v982, %v983
  %v1086 = vcombine.high %v984, %v985
  %v1088 = vunpack.c.l.s4 1966171168
  %v1089 = vunpack.c.0.s8 %v1088
  %v1090 = vlaneseq
  %v1091 = vshrl.u32 %v1090, 7
  %v1092 = vsub.s32 %v1089, %v1091
  %v1093 = vrot.slane %v1085, %v1092
  %v1095 = vunpack.c.l.s4 1966171168
  %v1096 = vunpack.c.0.s8 %v1095
  %v1097 = vlaneseq
  %v1098 = vshrl.u32 %v1097, 7
  %v1099 = vsub.s32 %v1096, %v1098
  %v1100 = vrot.slane %v1086, %v1099
  %v1101 = vcombine.low %v1093, %v1100
  %v1103 = vunpack.c.l.s4 1966171168
  %v1104 = vunpack.c.0.s8 %v1103
  %v1105 = vlaneseq
  %v1106 = vshrl.u32 %v1105, 7
  %v1107 = vsub.s32 %v1104, %v1106
  %v1108 = vrot.slane %v1101, %v1107
  %s1110 = scalar_lea.vmem %s5, 1
  %1111 = vst.msk [vmem:[%s1110] ss:$8 sm:$0xf] %vm1078, %v1108
  %1112 = vst.msk [vmem:[%s1110] ss:$8 sm:$0x0] %vm1078, %v1108
  %v1117 = vcombine.low %v1042, %v1043
  %v1118 = vcombine.low %v1044, %v1045
  %v1120 = vunpack.c.l.s4 1966171168
  %v1121 = vunpack.c.0.s8 %v1120
  %v1122 = vlaneseq
  %v1123 = vshrl.u32 %v1122, 7
  %v1124 = vsub.s32 %v1121, %v1123
  %v1125 = vrot.slane %v1117, %v1124
  %v1127 = vunpack.c.l.s4 1966171168
  %v1128 = vunpack.c.0.s8 %v1127
  %v1129 = vlaneseq
  %v1130 = vshrl.u32 %v1129, 7
  %v1131 = vsub.s32 %v1128, %v1130
  %v1132 = vrot.slane %v1118, %v1131
  %v1133 = vcombine.low %v1125, %v1132
  %v1135 = vunpack.c.l.s4 1966171168
  %v1136 = vunpack.c.0.s8 %v1135
  %v1137 = vlaneseq
  %v1138 = vshrl.u32 %v1137, 7
  %v1139 = vsub.s32 %v1136, %v1138
  %v1140 = vrot.slane %v1133, %v1139
  %s1142 = scalar_lea.vmem %s5, 2
  %1143 = vst.msk [vmem:[%s1142] ss:$8 sm:$0xf] %vm1078, %v1140
  %1144 = vst.msk [vmem:[%s1142] ss:$8 sm:$0x0] %vm1078, %v1140
  %1145 = vmatprep.subr.mxu0 0.0
  %1146 = vmatpush1.msra.mxu0 %v762
  %1147 = vmatprep.subr.mxu0 0.0
  %1148 = vmatpush1.msra.mxu0 %v763
  %1149 = vmatprep.subr.mxu0 0.0
  %1150 = vmatpush1.msra.mxu0 %v764
  %1151 = vmatprep.subr.mxu0 0.0
  %1152 = vmatpush1.msra.mxu0 %v765
  %1153 = vmatprep.subr.mxu0 0.0
  %1154 = vmatpush1.msra.mxu0 %v766
  %1155 = vmatprep.subr.mxu0 0.0
  %1156 = vmatpush1.msra.mxu0 %v767
  %1157 = vmatprep.subr.mxu0 0.0
  %1158 = vmatpush1.msra.mxu0 %v768
  %1159 = vmatprep.subr.mxu0 0.0
  %1160 = vmatpush1.msra.mxu0 %v769
  %1161 = vmatprep.subr.mxu0 0.0
  %1162 = vmatpush1.msra.mxu0 %v770
  %1163 = vmatprep.subr.mxu0 0.0
  %1164 = vmatpush1.msra.mxu0 %v771
  %1165 = vmatprep.subr.mxu0 0.0
  %1166 = vmatpush1.msra.mxu0 %v772
  %1167 = vmatprep.subr.mxu0 0.0
  %1168 = vmatpush1.msra.mxu0 %v773
  %1169 = vmatprep.subr.mxu0 0.0
  %1170 = vmatpush1.msra.mxu0 %v774
  %1171 = vmatprep.subr.mxu0 0.0
  %1172 = vmatpush1.msra.mxu0 %v775
  %1173 = vmatprep.subr.mxu0 0.0
  %1174 = vmatpush1.msra.mxu0 %v776
  %1175 = vmatprep.subr.mxu0 0.0
  %1176 = vmatpush1.msra.mxu0 %v777
  %1177 = vmatprep.subr.mxu0 0.0
  %1178 = vmatpush1.msra.mxu0 %v778
  %1179 = vmatprep.subr.mxu0 0.0
  %1180 = vmatpush1.msra.mxu0 %v779
  %1181 = vmatprep.subr.mxu0 0.0
  %1182 = vmatpush1.msra.mxu0 %v780
  %1183 = vmatprep.subr.mxu0 0.0
  %1184 = vmatpush1.msra.mxu0 %v781
  %1185 = vmatprep.subr.mxu0 0.0
  %1186 = vmatpush1.msra.mxu0 %v782
  %1187 = vmatprep.subr.mxu0 0.0
  %1188 = vmatpush1.msra.mxu0 %v783
  %1189 = vmatprep.subr.mxu0 0.0
  %1190 = vmatpush1.msra.mxu0 %v784
  %1191 = vmatprep.subr.mxu0 0.0
  %1192 = vmatpush1.msra.mxu0 %v785
  %1193 = vmatprep.subr.mxu0 0.0
  %1194 = vmatpush1.msra.mxu0 %v786
  %1195 = vmatprep.subr.mxu0 0.0
  %1196 = vmatpush1.msra.mxu0 %v787
  %1197 = vmatprep.subr.mxu0 0.0
  %1198 = vmatpush1.msra.mxu0 %v788
  %1199 = vmatprep.subr.mxu0 0.0
  %1200 = vmatpush1.msra.mxu0 %v789
  %1201 = vmatprep.subr.mxu0 0.0
  %1202 = vmatpush1.msra.mxu0 %v790
  %1203 = vmatprep.subr.mxu0 0.0
  %1204 = vmatpush1.msra.mxu0 %v791
  %1205 = vmatprep.subr.mxu0 0.0
  %1206 = vmatpush1.msra.mxu0 %v792
  %1207 = vmatprep.subr.mxu0 0.0
  %1208 = vmatpush1.msra.mxu0 %v793
  %1209 = vmatprep.mubr.f32.mxu0 %v907
  %1210 = vmatmul.mubr.f32.gmra.mrb[0].mxu0 %v906
  %v1211 = vpop.f32.mrb[0].mxu0
  %v1212 = vadd.f32 0.0, %v1211
  %v1213 = vpop.f32.mrb[0].mxu0
  %1214 = vdwg.mxu0
  %1215 = vmatprep.subr.mxu0 0.0
  %1216 = vmatpush1.msra.mxu0 %v794
  %1217 = vmatprep.subr.mxu0 0.0
  %1218 = vmatpush1.msra.mxu0 %v795
  %1219 = vmatprep.subr.mxu0 0.0
  %1220 = vmatpush1.msra.mxu0 %v796
  %1221 = vmatprep.subr.mxu0 0.0
  %1222 = vmatpush1.msra.mxu0 %v797
  %1223 = vmatprep.subr.mxu0 0.0
  %1224 = vmatpush1.msra.mxu0 %v798
  %1225 = vmatprep.subr.mxu0 0.0
  %1226 = vmatpush1.msra.mxu0 %v799
  %1227 = vmatprep.subr.mxu0 0.0
  %1228 = vmatpush1.msra.mxu0 %v800
  %1229 = vmatprep.subr.mxu0 0.0
  %1230 = vmatpush1.msra.mxu0 %v801
  %1231 = vmatprep.subr.mxu0 0.0
  %1232 = vmatpush1.msra.mxu0 %v802
  %1233 = vmatprep.subr.mxu0 0.0
  %1234 = vmatpush1.msra.mxu0 %v803
  %1235 = vmatprep.subr.mxu0 0.0
  %1236 = vmatpush1.msra.mxu0 %v804
  %1237 = vmatprep.subr.mxu0 0.0
  %1238 = vmatpush1.msra.mxu0 %v805
  %1239 = vmatprep.subr.mxu0 0.0
  %1240 = vmatpush1.msra.mxu0 %v806
  %1241 = vmatprep.subr.mxu0 0.0
  %1242 = vmatpush1.msra.mxu0 %v807
  %1243 = vmatprep.subr.mxu0 0.0
  %1244 = vmatpush1.msra.mxu0 %v808
  %1245 = vmatprep.subr.mxu0 0.0
  %1246 = vmatpush1.msra.mxu0 %v809
  %1247 = vmatprep.subr.mxu0 0.0
  %1248 = vmatpush1.msra.mxu0 %v810
  %1249 = vmatprep.subr.mxu0 0.0
  %1250 = vmatpush1.msra.mxu0 %v811
  %1251 = vmatprep.subr.mxu0 0.0
  %1252 = vmatpush1.msra.mxu0 %v812
  %1253 = vmatprep.subr.mxu0 0.0
  %1254 = vmatpush1.msra.mxu0 %v813
  %1255 = vmatprep.subr.mxu0 0.0
  %1256 = vmatpush1.msra.mxu0 %v814
  %1257 = vmatprep.subr.mxu0 0.0
  %1258 = vmatpush1.msra.mxu0 %v815
  %1259 = vmatprep.subr.mxu0 0.0
  %1260 = vmatpush1.msra.mxu0 %v816
  %1261 = vmatprep.subr.mxu0 0.0
  %1262 = vmatpush1.msra.mxu0 %v817
  %1263 = vmatprep.subr.mxu0 0.0
  %1264 = vmatpush1.msra.mxu0 %v818
  %1265 = vmatprep.subr.mxu0 0.0
  %1266 = vmatpush1.msra.mxu0 %v819
  %1267 = vmatprep.subr.mxu0 0.0
  %1268 = vmatpush1.msra.mxu0 %v820
  %1269 = vmatprep.subr.mxu0 0.0
  %1270 = vmatpush1.msra.mxu0 %v821
  %1271 = vmatprep.subr.mxu0 0.0
  %1272 = vmatpush1.msra.mxu0 %v822
  %1273 = vmatprep.subr.mxu0 0.0
  %1274 = vmatpush1.msra.mxu0 %v823
  %1275 = vmatprep.subr.mxu0 0.0
  %1276 = vmatpush1.msra.mxu0 %v824
  %1277 = vmatprep.subr.mxu0 0.0
  %1278 = vmatpush1.msra.mxu0 %v825
  %1279 = vmatprep.mubr.f32.mxu0 %v909
  %1280 = vmatmul.mubr.f32.gmra.mrb[0].mxu0 %v908
  %v1281 = vpop.f32.mrb[0].mxu0
  %v1282 = vadd.f32 %v1212, %v1281
  %v1283 = vpop.f32.mrb[0].mxu0
  %1284 = vdwg.mxu0
  %1285 = vst [vmem:[%s6] sm:$0x1] %v1282
  %v1286 = vrot.slane %v982, 4
  %v1287 = vrot.slane %v983, 4
  %v1288 = vrot.slane %v984, 4
  %v1289 = vrot.slane %v985, 4
  %1294 = vmatprep.subr.mxu0 0.0
  %1295 = vmatpush1.msra.mxu0 %v762
  %1296 = vmatprep.subr.mxu0 0.0
  %1297 = vmatpush1.msra.mxu0 %v763
  %1298 = vmatprep.subr.mxu0 0.0
  %1299 = vmatpush1.msra.mxu0 %v764
  %1300 = vmatprep.subr.mxu0 0.0
  %1301 = vmatpush1.msra.mxu0 %v765
  %1302 = vmatprep.subr.mxu0 0.0
  %1303 = vmatpush1.msra.mxu0 %v766
  %1304 = vmatprep.subr.mxu0 0.0
  %1305 = vmatpush1.msra.mxu0 %v767
  %1306 = vmatprep.subr.mxu0 0.0
  %1307 = vmatpush1.msra.mxu0 %v768
  %1308 = vmatprep.subr.mxu0 0.0
  %1309 = vmatpush1.msra.mxu0 %v769
  %1310 = vmatprep.subr.mxu0 0.0
  %1311 = vmatpush1.msra.mxu0 %v770
  %1312 = vmatprep.subr.mxu0 0.0
  %1313 = vmatpush1.msra.mxu0 %v771
  %1314 = vmatprep.subr.mxu0 0.0
  %1315 = vmatpush1.msra.mxu0 %v772
  %1316 = vmatprep.subr.mxu0 0.0
  %1317 = vmatpush1.msra.mxu0 %v773
  %1318 = vmatprep.subr.mxu0 0.0
  %1319 = vmatpush1.msra.mxu0 %v774
  %1320 = vmatprep.subr.mxu0 0.0
  %1321 = vmatpush1.msra.mxu0 %v775
  %1322 = vmatprep.subr.mxu0 0.0
  %1323 = vmatpush1.msra.mxu0 %v776
  %1324 = vmatprep.subr.mxu0 0.0
  %1325 = vmatpush1.msra.mxu0 %v777
  %1326 = vmatprep.subr.mxu0 0.0
  %1327 = vmatpush1.msra.mxu0 %v778
  %1328 = vmatprep.subr.mxu0 0.0
  %1329 = vmatpush1.msra.mxu0 %v779
  %1330 = vmatprep.subr.mxu0 0.0
  %1331 = vmatpush1.msra.mxu0 %v780
  %1332 = vmatprep.subr.mxu0 0.0
  %1333 = vmatpush1.msra.mxu0 %v781
  %1334 = vmatprep.subr.mxu0 0.0
  %1335 = vmatpush1.msra.mxu0 %v782
  %1336 = vmatprep.subr.mxu0 0.0
  %1337 = vmatpush1.msra.mxu0 %v783
  %1338 = vmatprep.subr.mxu0 0.0
  %1339 = vmatpush1.msra.mxu0 %v784
  %1340 = vmatprep.subr.mxu0 0.0
  %1341 = vmatpush1.msra.mxu0 %v785
  %1342 = vmatprep.subr.mxu0 0.0
  %1343 = vmatpush1.msra.mxu0 %v786
  %1344 = vmatprep.subr.mxu0 0.0
  %1345 = vmatpush1.msra.mxu0 %v787
  %1346 = vmatprep.subr.mxu0 0.0
  %1347 = vmatpush1.msra.mxu0 %v788
  %1348 = vmatprep.subr.mxu0 0.0
  %1349 = vmatpush1.msra.mxu0 %v789
  %1350 = vmatprep.subr.mxu0 0.0
  %1351 = vmatpush1.msra.mxu0 %v790
  %1352 = vmatprep.subr.mxu0 0.0
  %1353 = vmatpush1.msra.mxu0 %v791
  %1354 = vmatprep.subr.mxu0 0.0
  %1355 = vmatpush1.msra.mxu0 %v792
  %1356 = vmatprep.subr.mxu0 0.0
  %1357 = vmatpush1.msra.mxu0 %v793
  %1358 = vmatprep.mubr.f32.mxu0 %v1287
  %1359 = vmatmul.mubr.f32.gmra.mrb[0].mxu0 %v1286
  %v1360 = vpop.f32.mrb[0].mxu0
  %v1361 = vadd.f32 0.0, %v1360
  %v1362 = vpop.f32.mrb[0].mxu0
  %1363 = vdwg.mxu0
  %1364 = vmatprep.subr.mxu0 0.0
  %1365 = vmatpush1.msra.mxu0 %v794
  %1366 = vmatprep.subr.mxu0 0.0
  %1367 = vmatpush1.msra.mxu0 %v795
  %1368 = vmatprep.subr.mxu0 0.0
  %1369 = vmatpush1.msra.mxu0 %v796
  %1370 = vmatprep.subr.mxu0 0.0
  %1371 = vmatpush1.msra.mxu0 %v797
  %1372 = vmatprep.subr.mxu0 0.0
  %1373 = vmatpush1.msra.mxu0 %v798
  %1374 = vmatprep.subr.mxu0 0.0
  %1375 = vmatpush1.msra.mxu0 %v799
  %1376 = vmatprep.subr.mxu0 0.0
  %1377 = vmatpush1.msra.mxu0 %v800
  %1378 = vmatprep.subr.mxu0 0.0
  %1379 = vmatpush1.msra.mxu0 %v801
  %1380 = vmatprep.subr.mxu0 0.0
  %1381 = vmatpush1.msra.mxu0 %v802
  %1382 = vmatprep.subr.mxu0 0.0
  %1383 = vmatpush1.msra.mxu0 %v803
  %1384 = vmatprep.subr.mxu0 0.0
  %1385 = vmatpush1.msra.mxu0 %v804
  %1386 = vmatprep.subr.mxu0 0.0
  %1387 = vmatpush1.msra.mxu0 %v805
  %1388 = vmatprep.subr.mxu0 0.0
  %1389 = vmatpush1.msra.mxu0 %v806
  %1390 = vmatprep.subr.mxu0 0.0
  %1391 = vmatpush1.msra.mxu0 %v807
  %1392 = vmatprep.subr.mxu0 0.0
  %1393 = vmatpush1.msra.mxu0 %v808
  %1394 = vmatprep.subr.mxu0 0.0
  %1395 = vmatpush1.msra.mxu0 %v809
  %1396 = vmatprep.subr.mxu0 0.0
  %1397 = vmatpush1.msra.mxu0 %v810
  %1398 = vmatprep.subr.mxu0 0.0
  %1399 = vmatpush1.msra.mxu0 %v811
  %1400 = vmatprep.subr.mxu0 0.0
  %1401 = vmatpush1.msra.mxu0 %v812
  %1402 = vmatprep.subr.mxu0 0.0
  %1403 = vmatpush1.msra.mxu0 %v813
  %1404 = vmatprep.subr.mxu0 0.0
  %1405 = vmatpush1.msra.mxu0 %v814
  %1406 = vmatprep.subr.mxu0 0.0
  %1407 = vmatpush1.msra.mxu0 %v815
  %1408 = vmatprep.subr.mxu0 0.0
  %1409 = vmatpush1.msra.mxu0 %v816
  %1410 = vmatprep.subr.mxu0 0.0
  %1411 = vmatpush1.msra.mxu0 %v817
  %1412 = vmatprep.subr.mxu0 0.0
  %1413 = vmatpush1.msra.mxu0 %v818
  %1414 = vmatprep.subr.mxu0 0.0
  %1415 = vmatpush1.msra.mxu0 %v819
  %1416 = vmatprep.subr.mxu0 0.0
  %1417 = vmatpush1.msra.mxu0 %v820
  %1418 = vmatprep.subr.mxu0 0.0
  %1419 = vmatpush1.msra.mxu0 %v821
  %1420 = vmatprep.subr.mxu0 0.0
  %1421 = vmatpush1.msra.mxu0 %v822
  %1422 = vmatprep.subr.mxu0 0.0
  %1423 = vmatpush1.msra.mxu0 %v823
  %1424 = vmatprep.subr.mxu0 0.0
  %1425 = vmatpush1.msra.mxu0 %v824
  %1426 = vmatprep.subr.mxu0 0.0
  %1427 = vmatpush1.msra.mxu0 %v825
  %1428 = vmatprep.mubr.f32.mxu0 %v1289
  %1429 = vmatmul.mubr.f32.gmra.mrb[0].mxu0 %v1288
  %v1430 = vpop.f32.mrb[0].mxu0
  %v1431 = vadd.f32 %v1361, %v1430
  %v1432 = vpop.f32.mrb[0].mxu0
  %1433 = vdwg.mxu0
  %1434 = vst [vmem:[%s6 + $0x1] sm:$0x1] %v1431
  %1435 = vmatprep.subr.mxu0 0.0
  %1436 = vmatpush1.msra.mxu0 %v762
  %1437 = vmatprep.subr.mxu0 0.0
  %1438 = vmatpush1.msra.mxu0 %v763
  %1439 = vmatprep.subr.mxu0 0.0
  %1440 = vmatpush1.msra.mxu0 %v764
  %1441 = vmatprep.subr.mxu0 0.0
  %1442 = vmatpush1.msra.mxu0 %v765
  %1443 = vmatprep.subr.mxu0 0.0
  %1444 = vmatpush1.msra.mxu0 %v766
  %1445 = vmatprep.subr.mxu0 0.0
  %1446 = vmatpush1.msra.mxu0 %v767
  %1447 = vmatprep.subr.mxu0 0.0
  %1448 = vmatpush1.msra.mxu0 %v768
  %1449 = vmatprep.subr.mxu0 0.0
  %1450 = vmatpush1.msra.mxu0 %v769
  %1451 = vmatprep.subr.mxu0 0.0
  %1452 = vmatpush1.msra.mxu0 %v770
  %1453 = vmatprep.subr.mxu0 0.0
  %1454 = vmatpush1.msra.mxu0 %v771
  %1455 = vmatprep.subr.mxu0 0.0
  %1456 = vmatpush1.msra.mxu0 %v772
  %1457 = vmatprep.subr.mxu0 0.0
  %1458 = vmatpush1.msra.mxu0 %v773
  %1459 = vmatprep.subr.mxu0 0.0
  %1460 = vmatpush1.msra.mxu0 %v774
  %1461 = vmatprep.subr.mxu0 0.0
  %1462 = vmatpush1.msra.mxu0 %v775
  %1463 = vmatprep.subr.mxu0 0.0
  %1464 = vmatpush1.msra.mxu0 %v776
  %1465 = vmatprep.subr.mxu0 0.0
  %1466 = vmatpush1.msra.mxu0 %v777
  %1467 = vmatprep.subr.mxu0 0.0
  %1468 = vmatpush1.msra.mxu0 %v778
  %1469 = vmatprep.subr.mxu0 0.0
  %1470 = vmatpush1.msra.mxu0 %v779
  %1471 = vmatprep.subr.mxu0 0.0
  %1472 = vmatpush1.msra.mxu0 %v780
  %1473 = vmatprep.subr.mxu0 0.0
  %1474 = vmatpush1.msra.mxu0 %v781
  %1475 = vmatprep.subr.mxu0 0.0
  %1476 = vmatpush1.msra.mxu0 %v782
  %1477 = vmatprep.subr.mxu0 0.0
  %1478 = vmatpush1.msra.mxu0 %v783
  %1479 = vmatprep.subr.mxu0 0.0
  %1480 = vmatpush1.msra.mxu0 %v784
  %1481 = vmatprep.subr.mxu0 0.0
  %1482 = vmatpush1.msra.mxu0 %v785
  %1483 = vmatprep.subr.mxu0 0.0
  %1484 = vmatpush1.msra.mxu0 %v786
  %1485 = vmatprep.subr.mxu0 0.0
  %1486 = vmatpush1.msra.mxu0 %v787
  %1487 = vmatprep.subr.mxu0 0.0
  %1488 = vmatpush1.msra.mxu0 %v788
  %1489 = vmatprep.subr.mxu0 0.0
  %1490 = vmatpush1.msra.mxu0 %v789
  %1491 = vmatprep.subr.mxu0 0.0
  %1492 = vmatpush1.msra.mxu0 %v790
  %1493 = vmatprep.subr.mxu0 0.0
  %1494 = vmatpush1.msra.mxu0 %v791
  %1495 = vmatprep.subr.mxu0 0.0
  %1496 = vmatpush1.msra.mxu0 %v792
  %1497 = vmatprep.subr.mxu0 0.0
  %1498 = vmatpush1.msra.mxu0 %v793
  %1499 = vmatprep.mubr.f32.mxu0 %v1043
  %1500 = vmatmul.mubr.f32.gmra.mrb[0].mxu0 %v1042
  %v1501 = vpop.f32.mrb[0].mxu0
  %v1502 = vadd.f32 0.0, %v1501
  %v1503 = vpop.f32.mrb[0].mxu0
  %1504 = vdwg.mxu0
  %1505 = vmatprep.subr.mxu0 0.0
  %1506 = vmatpush1.msra.mxu0 %v794
  %1507 = vmatprep.subr.mxu0 0.0
  %1508 = vmatpush1.msra.mxu0 %v795
  %1509 = vmatprep.subr.mxu0 0.0
  %1510 = vmatpush1.msra.mxu0 %v796
  %1511 = vmatprep.subr.mxu0 0.0
  %1512 = vmatpush1.msra.mxu0 %v797
  %1513 = vmatprep.subr.mxu0 0.0
  %1514 = vmatpush1.msra.mxu0 %v798
  %1515 = vmatprep.subr.mxu0 0.0
  %1516 = vmatpush1.msra.mxu0 %v799
  %1517 = vmatprep.subr.mxu0 0.0
  %1518 = vmatpush1.msra.mxu0 %v800
  %1519 = vmatprep.subr.mxu0 0.0
  %1520 = vmatpush1.msra.mxu0 %v801
  %1521 = vmatprep.subr.mxu0 0.0
  %1522 = vmatpush1.msra.mxu0 %v802
  %1523 = vmatprep.subr.mxu0 0.0
  %1524 = vmatpush1.msra.mxu0 %v803
  %1525 = vmatprep.subr.mxu0 0.0
  %1526 = vmatpush1.msra.mxu0 %v804
  %1527 = vmatprep.subr.mxu0 0.0
  %1528 = vmatpush1.msra.mxu0 %v805
  %1529 = vmatprep.subr.mxu0 0.0
  %1530 = vmatpush1.msra.mxu0 %v806
  %1531 = vmatprep.subr.mxu0 0.0
  %1532 = vmatpush1.msra.mxu0 %v807
  %1533 = vmatprep.subr.mxu0 0.0
  %1534 = vmatpush1.msra.mxu0 %v808
  %1535 = vmatprep.subr.mxu0 0.0
  %1536 = vmatpush1.msra.mxu0 %v809
  %1537 = vmatprep.subr.mxu0 0.0
  %1538 = vmatpush1.msra.mxu0 %v810
  %1539 = vmatprep.subr.mxu0 0.0
  %1540 = vmatpush1.msra.mxu0 %v811
  %1541 = vmatprep.subr.mxu0 0.0
  %1542 = vmatpush1.msra.mxu0 %v812
  %1543 = vmatprep.subr.mxu0 0.0
  %1544 = vmatpush1.msra.mxu0 %v813
  %1545 = vmatprep.subr.mxu0 0.0
  %1546 = vmatpush1.msra.mxu0 %v814
  %1547 = vmatprep.subr.mxu0 0.0
  %1548 = vmatpush1.msra.mxu0 %v815
  %1549 = vmatprep.subr.mxu0 0.0
  %1550 = vmatpush1.msra.mxu0 %v816
  %1551 = vmatprep.subr.mxu0 0.0
  %1552 = vmatpush1.msra.mxu0 %v817
  %1553 = vmatprep.subr.mxu0 0.0
  %1554 = vmatpush1.msra.mxu0 %v818
  %1555 = vmatprep.subr.mxu0 0.0
  %1556 = vmatpush1.msra.mxu0 %v819
  %1557 = vmatprep.subr.mxu0 0.0
  %1558 = vmatpush1.msra.mxu0 %v820
  %1559 = vmatprep.subr.mxu0 0.0
  %1560 = vmatpush1.msra.mxu0 %v821
  %1561 = vmatprep.subr.mxu0 0.0
  %1562 = vmatpush1.msra.mxu0 %v822
  %1563 = vmatprep.subr.mxu0 0.0
  %1564 = vmatpush1.msra.mxu0 %v823
  %1565 = vmatprep.subr.mxu0 0.0
  %1566 = vmatpush1.msra.mxu0 %v824
  %1567 = vmatprep.subr.mxu0 0.0
  %1568 = vmatpush1.msra.mxu0 %v825
  %1569 = vmatprep.mubr.f32.mxu0 %v1045
  %1570 = vmatmul.mubr.f32.gmra.mrb[0].mxu0 %v1044
  %v1571 = vpop.f32.mrb[0].mxu0
  %v1572 = vadd.f32 %v1502, %v1571
  %v1573 = vpop.f32.mrb[0].mxu0
  %1574 = vdwg.mxu0
  %1575 = vst [vmem:[%s6 + $0x2] sm:$0x1] %v1572
  %v1576 = vrot.slane %v352, 1
  %v1577 = vrot.slane %v354, 1
  %v1578 = vrot.slane %v393, 1
  %v1579 = vrot.slane %v395, 1
  %v1584 = vmul.f32 %v663, %v1576
  %v1585 = vmul.f32 %v665, %v1577
  %v1586 = vmul.f32 %v752, %v1578
  %v1587 = vmul.f32 %v754, %v1579
  %v1588 = vmul.f32 %v663, %v434
  %v1589 = vmul.f32 %v665, %v436
  %v1590 = vmul.f32 %v752, %v475
  %v1591 = vmul.f32 %v754, %v477
  %v1596 = vrot.slane %v1588, 1
  %v1597 = vrot.slane %v1589, 1
  %v1598 = vrot.slane %v1590, 1
  %v1599 = vrot.slane %v1591, 1
  %v1604 = vadd.f32 %v1584, %v1596
  %v1605 = vadd.f32 %v1585, %v1597
  %v1606 = vadd.f32 %v1586, %v1598
  %v1607 = vadd.f32 %v1587, %v1599
  %v1608 = vrot.slane %v516, 7
  %v1609 = vrot.slane %v518, 7
  %v1610 = vrot.slane %v557, 7
  %v1611 = vrot.slane %v559, 7
  %v1616 = vmul.f32 %v663, %v1608
  %v1617 = vmul.f32 %v665, %v1609
  %v1618 = vmul.f32 %v752, %v1610
  %v1619 = vmul.f32 %v754, %v1611
  %v1624 = vrot.slane %v1616, 2
  %v1625 = vrot.slane %v1617, 2
  %v1626 = vrot.slane %v1618, 2
  %v1627 = vrot.slane %v1619, 2
  %v1632 = vadd.f32 %v1604, %v1624
  %v1633 = vadd.f32 %v1605, %v1625
  %v1634 = vadd.f32 %v1606, %v1626
  %v1635 = vadd.f32 %v1607, %v1627
  %v1640 = vrot.slane %v663, 3
  %v1641 = vrot.slane %v665, 3
  %v1642 = vrot.slane %v752, 3
  %v1643 = vrot.slane %v754, 3
  %v1648 = vadd.f32 %v1632, %v1640
  %v1649 = vadd.f32 %v1633, %v1641
  %v1650 = vadd.f32 %v1634, %v1642
  %v1651 = vadd.f32 %v1635, %v1643
  %v1652 = vrot.slane %v352, 5
  %v1653 = vrot.slane %v354, 5
  %v1654 = vrot.slane %v393, 5
  %v1655 = vrot.slane %v395, 5
  %v1660 = vmul.f32 %v663, %v1652
  %v1661 = vmul.f32 %v665, %v1653
  %v1662 = vmul.f32 %v752, %v1654
  %v1663 = vmul.f32 %v754, %v1655
  %v1664 = vrot.slane %v434, 4
  %v1665 = vrot.slane %v436, 4
  %v1666 = vrot.slane %v475, 4
  %v1667 = vrot.slane %v477, 4
  %v1672 = vmul.f32 %v663, %v1664
  %v1673 = vmul.f32 %v665, %v1665
  %v1674 = vmul.f32 %v752, %v1666
  %v1675 = vmul.f32 %v754, %v1667
  %v1680 = vrot.slane %v1672, 1
  %v1681 = vrot.slane %v1673, 1
  %v1682 = vrot.slane %v1674, 1
  %v1683 = vrot.slane %v1675, 1
  %v1688 = vadd.f32 %v1660, %v1680
  %v1689 = vadd.f32 %v1661, %v1681
  %v1690 = vadd.f32 %v1662, %v1682
  %v1691 = vadd.f32 %v1663, %v1683
  %v1692 = vrot.slane %v516, 3
  %v1693 = vrot.slane %v518, 3
  %v1694 = vrot.slane %v557, 3
  %v1695 = vrot.slane %v559, 3
  %v1700 = vmul.f32 %v663, %v1692
  %v1701 = vmul.f32 %v665, %v1693
  %v1702 = vmul.f32 %v752, %v1694
  %v1703 = vmul.f32 %v754, %v1695
  %v1708 = vrot.slane %v1700, 2
  %v1709 = vrot.slane %v1701, 2
  %v1710 = vrot.slane %v1702, 2
  %v1711 = vrot.slane %v1703, 2
  %v1716 = vadd.f32 %v1688, %v1708
  %v1717 = vadd.f32 %v1689, %v1709
  %v1718 = vadd.f32 %v1690, %v1710
  %v1719 = vadd.f32 %v1691, %v1711
  %v1720 = vadd.f32 %v1716, %v1640
  %v1721 = vadd.f32 %v1717, %v1641
  %v1722 = vadd.f32 %v1718, %v1642
  %v1723 = vadd.f32 %v1719, %v1643
  %v1724 = vmul.f32 %v669, %v1576
  %v1725 = vmul.f32 %v671, %v1577
  %v1726 = vmul.f32 %v758, %v1578
  %v1727 = vmul.f32 %v760, %v1579
  %v1728 = vmul.f32 %v669, %v434
  %v1729 = vmul.f32 %v671, %v436
  %v1730 = vmul.f32 %v758, %v475
  %v1731 = vmul.f32 %v760, %v477
  %v1736 = vrot.slane %v1728, 1
  %v1737 = vrot.slane %v1729, 1
  %v1738 = vrot.slane %v1730, 1
  %v1739 = vrot.slane %v1731, 1
  %v1744 = vadd.f32 %v1724, %v1736
  %v1745 = vadd.f32 %v1725, %v1737
  %v1746 = vadd.f32 %v1726, %v1738
  %v1747 = vadd.f32 %v1727, %v1739
  %v1748 = vmul.f32 %v669, %v1608
  %v1749 = vmul.f32 %v671, %v1609
  %v1750 = vmul.f32 %v758, %v1610
  %v1751 = vmul.f32 %v760, %v1611
  %v1756 = vrot.slane %v1748, 2
  %v1757 = vrot.slane %v1749, 2
  %v1758 = vrot.slane %v1750, 2
  %v1759 = vrot.slane %v1751, 2
  %v1764 = vadd.f32 %v1744, %v1756
  %v1765 = vadd.f32 %v1745, %v1757
  %v1766 = vadd.f32 %v1746, %v1758
  %v1767 = vadd.f32 %v1747, %v1759
  %v1772 = vrot.slane %v669, 3
  %v1773 = vrot.slane %v671, 3
  %v1774 = vrot.slane %v758, 3
  %v1775 = vrot.slane %v760, 3
  %v1780 = vadd.f32 %v1764, %v1772
  %v1781 = vadd.f32 %v1765, %v1773
  %v1782 = vadd.f32 %v1766, %v1774
  %v1783 = vadd.f32 %v1767, %v1775
  %v1788 = vcombine.low %v1648, %v1649
  %v1789 = vcombine.low %v1650, %v1651
  %v1791 = vunpack.c.l.s4 1966171168
  %v1792 = vunpack.c.0.s8 %v1791
  %v1793 = vlaneseq
  %v1794 = vshrl.u32 %v1793, 7
  %v1795 = vsub.s32 %v1792, %v1794
  %v1796 = vrot.slane %v1788, %v1795
  %v1798 = vunpack.c.l.s4 1966171168
  %v1799 = vunpack.c.0.s8 %v1798
  %v1800 = vlaneseq
  %v1801 = vshrl.u32 %v1800, 7
  %v1802 = vsub.s32 %v1799, %v1801
  %v1803 = vrot.slane %v1789, %v1802
  %v1804 = vcombine.low %v1796, %v1803
  %v1806 = vunpack.c.l.s4 1966171168
  %v1807 = vunpack.c.0.s8 %v1806
  %v1808 = vlaneseq
  %v1809 = vshrl.u32 %v1808, 7
  %v1810 = vsub.s32 %v1807, %v1809
  %v1811 = vrot.slane %v1804, %v1810
  %s1813 = scalar_lea.vmem %s5, 3
  %1814 = vst.msk [vmem:[%s1813] ss:$8 sm:$0xf] %vm1078, %v1811
  %1815 = vst.msk [vmem:[%s1813] ss:$8 sm:$0x0] %vm1078, %v1811
  %v1820 = vcombine.high %v1720, %v1721
  %v1821 = vcombine.high %v1722, %v1723
  %v1823 = vunpack.c.l.s4 1966171168
  %v1824 = vunpack.c.0.s8 %v1823
  %v1825 = vlaneseq
  %v1826 = vshrl.u32 %v1825, 7
  %v1827 = vsub.s32 %v1824, %v1826
  %v1828 = vrot.slane %v1820, %v1827
  %v1830 = vunpack.c.l.s4 1966171168
  %v1831 = vunpack.c.0.s8 %v1830
  %v1832 = vlaneseq
  %v1833 = vshrl.u32 %v1832, 7
  %v1834 = vsub.s32 %v1831, %v1833
  %v1835 = vrot.slane %v1821, %v1834
  %v1836 = vcombine.low %v1828, %v1835
  %v1838 = vunpack.c.l.s4 1966171168
  %v1839 = vunpack.c.0.s8 %v1838
  %v1840 = vlaneseq
  %v1841 = vshrl.u32 %v1840, 7
  %v1842 = vsub.s32 %v1839, %v1841
  %v1843 = vrot.slane %v1836, %v1842
  %s1845 = scalar_lea.vmem %s5, 4
  %1846 = vst.msk [vmem:[%s1845] ss:$8 sm:$0xf] %vm1078, %v1843
  %1847 = vst.msk [vmem:[%s1845] ss:$8 sm:$0x0] %vm1078, %v1843
  %v1852 = vcombine.low %v1780, %v1781
  %v1853 = vcombine.low %v1782, %v1783
  %v1855 = vunpack.c.l.s4 1966171168
  %v1856 = vunpack.c.0.s8 %v1855
  %v1857 = vlaneseq
  %v1858 = vshrl.u32 %v1857, 7
  %v1859 = vsub.s32 %v1856, %v1858
  %v1860 = vrot.slane %v1852, %v1859
  %v1862 = vunpack.c.l.s4 1966171168
  %v1863 = vunpack.c.0.s8 %v1862
  %v1864 = vlaneseq
  %v1865 = vshrl.u32 %v1864, 7
  %v1866 = vsub.s32 %v1863, %v1865
  %v1867 = vrot.slane %v1853, %v1866
  %v1868 = vcombine.low %v1860, %v1867
  %v1870 = vunpack.c.l.s4 1966171168
  %v1871 = vunpack.c.0.s8 %v1870
  %v1872 = vlaneseq
  %v1873 = vshrl.u32 %v1872, 7
  %v1874 = vsub.s32 %v1871, %v1873
  %v1875 = vrot.slane %v1868, %v1874
  %s1877 = scalar_lea.vmem %s5, 5
  %1878 = vst.msk [vmem:[%s1877] ss:$8 sm:$0xf] %vm1078, %v1875
  %1879 = vst.msk [vmem:[%s1877] ss:$8 sm:$0x0] %vm1078, %v1875
  %1880 = vmatprep.subr.mxu0 0.0
  %1881 = vmatpush1.msra.mxu0 %v762
  %1882 = vmatprep.subr.mxu0 0.0
  %1883 = vmatpush1.msra.mxu0 %v763
  %1884 = vmatprep.subr.mxu0 0.0
  %1885 = vmatpush1.msra.mxu0 %v764
  %1886 = vmatprep.subr.mxu0 0.0
  %1887 = vmatpush1.msra.mxu0 %v765
  %1888 = vmatprep.subr.mxu0 0.0
  %1889 = vmatpush1.msra.mxu0 %v766
  %1890 = vmatprep.subr.mxu0 0.0
  %1891 = vmatpush1.msra.mxu0 %v767
  %1892 = vmatprep.subr.mxu0 0.0
  %1893 = vmatpush1.msra.mxu0 %v768
  %1894 = vmatprep.subr.mxu0 0.0
  %1895 = vmatpush1.msra.mxu0 %v769
  %1896 = vmatprep.subr.mxu0 0.0
  %1897 = vmatpush1.msra.mxu0 %v770
  %1898 = vmatprep.subr.mxu0 0.0
  %1899 = vmatpush1.msra.mxu0 %v771
  %1900 = vmatprep.subr.mxu0 0.0
  %1901 = vmatpush1.msra.mxu0 %v772
  %1902 = vmatprep.subr.mxu0 0.0
  %1903 = vmatpush1.msra.mxu0 %v773
  %1904 = vmatprep.subr.mxu0 0.0
  %1905 = vmatpush1.msra.mxu0 %v774
  %1906 = vmatprep.subr.mxu0 0.0
  %1907 = vmatpush1.msra.mxu0 %v775
  %1908 = vmatprep.subr.mxu0 0.0
  %1909 = vmatpush1.msra.mxu0 %v776
  %1910 = vmatprep.subr.mxu0 0.0
  %1911 = vmatpush1.msra.mxu0 %v777
  %1912 = vmatprep.subr.mxu0 0.0
  %1913 = vmatpush1.msra.mxu0 %v778
  %1914 = vmatprep.subr.mxu0 0.0
  %1915 = vmatpush1.msra.mxu0 %v779
  %1916 = vmatprep.subr.mxu0 0.0
  %1917 = vmatpush1.msra.mxu0 %v780
  %1918 = vmatprep.subr.mxu0 0.0
  %1919 = vmatpush1.msra.mxu0 %v781
  %1920 = vmatprep.subr.mxu0 0.0
  %1921 = vmatpush1.msra.mxu0 %v782
  %1922 = vmatprep.subr.mxu0 0.0
  %1923 = vmatpush1.msra.mxu0 %v783
  %1924 = vmatprep.subr.mxu0 0.0
  %1925 = vmatpush1.msra.mxu0 %v784
  %1926 = vmatprep.subr.mxu0 0.0
  %1927 = vmatpush1.msra.mxu0 %v785
  %1928 = vmatprep.subr.mxu0 0.0
  %1929 = vmatpush1.msra.mxu0 %v786
  %1930 = vmatprep.subr.mxu0 0.0
  %1931 = vmatpush1.msra.mxu0 %v787
  %1932 = vmatprep.subr.mxu0 0.0
  %1933 = vmatpush1.msra.mxu0 %v788
  %1934 = vmatprep.subr.mxu0 0.0
  %1935 = vmatpush1.msra.mxu0 %v789
  %1936 = vmatprep.subr.mxu0 0.0
  %1937 = vmatpush1.msra.mxu0 %v790
  %1938 = vmatprep.subr.mxu0 0.0
  %1939 = vmatpush1.msra.mxu0 %v791
  %1940 = vmatprep.subr.mxu0 0.0
  %1941 = vmatpush1.msra.mxu0 %v792
  %1942 = vmatprep.subr.mxu0 0.0
  %1943 = vmatpush1.msra.mxu0 %v793
  %1944 = vmatprep.mubr.f32.mxu0 %v1649
  %1945 = vmatmul.mubr.f32.gmra.mrb[0].mxu0 %v1648
  %v1946 = vpop.f32.mrb[0].mxu0
  %v1947 = vadd.f32 0.0, %v1946
  %v1948 = vpop.f32.mrb[0].mxu0
  %1949 = vdwg.mxu0
  %1950 = vmatprep.subr.mxu0 0.0
  %1951 = vmatpush1.msra.mxu0 %v794
  %1952 = vmatprep.subr.mxu0 0.0
  %1953 = vmatpush1.msra.mxu0 %v795
  %1954 = vmatprep.subr.mxu0 0.0
  %1955 = vmatpush1.msra.mxu0 %v796
  %1956 = vmatprep.subr.mxu0 0.0
  %1957 = vmatpush1.msra.mxu0 %v797
  %1958 = vmatprep.subr.mxu0 0.0
  %1959 = vmatpush1.msra.mxu0 %v798
  %1960 = vmatprep.subr.mxu0 0.0
  %1961 = vmatpush1.msra.mxu0 %v799
  %1962 = vmatprep.subr.mxu0 0.0
  %1963 = vmatpush1.msra.mxu0 %v800
  %1964 = vmatprep.subr.mxu0 0.0
  %1965 = vmatpush1.msra.mxu0 %v801
  %1966 = vmatprep.subr.mxu0 0.0
  %1967 = vmatpush1.msra.mxu0 %v802
  %1968 = vmatprep.subr.mxu0 0.0
  %1969 = vmatpush1.msra.mxu0 %v803
  %1970 = vmatprep.subr.mxu0 0.0
  %1971 = vmatpush1.msra.mxu0 %v804
  %1972 = vmatprep.subr.mxu0 0.0
  %1973 = vmatpush1.msra.mxu0 %v805
  %1974 = vmatprep.subr.mxu0 0.0
  %1975 = vmatpush1.msra.mxu0 %v806
  %1976 = vmatprep.subr.mxu0 0.0
  %1977 = vmatpush1.msra.mxu0 %v807
  %1978 = vmatprep.subr.mxu0 0.0
  %1979 = vmatpush1.msra.mxu0 %v808
  %1980 = vmatprep.subr.mxu0 0.0
  %1981 = vmatpush1.msra.mxu0 %v809
  %1982 = vmatprep.subr.mxu0 0.0
  %1983 = vmatpush1.msra.mxu0 %v810
  %1984 = vmatprep.subr.mxu0 0.0
  %1985 = vmatpush1.msra.mxu0 %v811
  %1986 = vmatprep.subr.mxu0 0.0
  %1987 = vmatpush1.msra.mxu0 %v812
  %1988 = vmatprep.subr.mxu0 0.0
  %1989 = vmatpush1.msra.mxu0 %v813
  %1990 = vmatprep.subr.mxu0 0.0
  %1991 = vmatpush1.msra.mxu0 %v814
  %1992 = vmatprep.subr.mxu0 0.0
  %1993 = vmatpush1.msra.mxu0 %v815
  %1994 = vmatprep.subr.mxu0 0.0
  %1995 = vmatpush1.msra.mxu0 %v816
  %1996 = vmatprep.subr.mxu0 0.0
  %1997 = vmatpush1.msra.mxu0 %v817
  %1998 = vmatprep.subr.mxu0 0.0
  %1999 = vmatpush1.msra.mxu0 %v818
  %2000 = vmatprep.subr.mxu0 0.0
  %2001 = vmatpush1.msra.mxu0 %v819
  %2002 = vmatprep.subr.mxu0 0.0
  %2003 = vmatpush1.msra.mxu0 %v820
  %2004 = vmatprep.subr.mxu0 0.0
  %2005 = vmatpush1.msra.mxu0 %v821
  %2006 = vmatprep.subr.mxu0 0.0
  %2007 = vmatpush1.msra.mxu0 %v822
  %2008 = vmatprep.subr.mxu0 0.0
  %2009 = vmatpush1.msra.mxu0 %v823
  %2010 = vmatprep.subr.mxu0 0.0
  %2011 = vmatpush1.msra.mxu0 %v824
  %2012 = vmatprep.subr.mxu0 0.0
  %2013 = vmatpush1.msra.mxu0 %v825
  %2014 = vmatprep.mubr.f32.mxu0 %v1651
  %2015 = vmatmul.mubr.f32.gmra.mrb[0].mxu0 %v1650
  %v2016 = vpop.f32.mrb[0].mxu0
  %v2017 = vadd.f32 %v1947, %v2016
  %v2018 = vpop.f32.mrb[0].mxu0
  %2019 = vdwg.mxu0
  %2020 = vst [vmem:[%s6 + $0x3] sm:$0x1] %v2017
  %v2021 = vrot.slane %v1720, 4
  %v2022 = vrot.slane %v1721, 4
  %v2023 = vrot.slane %v1722, 4
  %v2024 = vrot.slane %v1723, 4
  %2029 = vmatprep.subr.mxu0 0.0
  %2030 = vmatpush1.msra.mxu0 %v762
  %2031 = vmatprep.subr.mxu0 0.0
  %2032 = vmatpush1.msra.mxu0 %v763
  %2033 = vmatprep.subr.mxu0 0.0
  %2034 = vmatpush1.msra.mxu0 %v764
  %2035 = vmatprep.subr.mxu0 0.0
  %2036 = vmatpush1.msra.mxu0 %v765
  %2037 = vmatprep.subr.mxu0 0.0
  %2038 = vmatpush1.msra.mxu0 %v766
  %2039 = vmatprep.subr.mxu0 0.0
  %2040 = vmatpush1.msra.mxu0 %v767
  %2041 = vmatprep.subr.mxu0 0.0
  %2042 = vmatpush1.msra.mxu0 %v768
  %2043 = vmatprep.subr.mxu0 0.0
  %2044 = vmatpush1.msra.mxu0 %v769
  %2045 = vmatprep.subr.mxu0 0.0
  %2046 = vmatpush1.msra.mxu0 %v770
  %2047 = vmatprep.subr.mxu0 0.0
  %2048 = vmatpush1.msra.mxu0 %v771
  %2049 = vmatprep.subr.mxu0 0.0
  %2050 = vmatpush1.msra.mxu0 %v772
  %2051 = vmatprep.subr.mxu0 0.0
  %2052 = vmatpush1.msra.mxu0 %v773
  %2053 = vmatprep.subr.mxu0 0.0
  %2054 = vmatpush1.msra.mxu0 %v774
  %2055 = vmatprep.subr.mxu0 0.0
  %2056 = vmatpush1.msra.mxu0 %v775
  %2057 = vmatprep.subr.mxu0 0.0
  %2058 = vmatpush1.msra.mxu0 %v776
  %2059 = vmatprep.subr.mxu0 0.0
  %2060 = vmatpush1.msra.mxu0 %v777
  %2061 = vmatprep.subr.mxu0 0.0
  %2062 = vmatpush1.msra.mxu0 %v778
  %2063 = vmatprep.subr.mxu0 0.0
  %2064 = vmatpush1.msra.mxu0 %v779
  %2065 = vmatprep.subr.mxu0 0.0
  %2066 = vmatpush1.msra.mxu0 %v780
  %2067 = vmatprep.subr.mxu0 0.0
  %2068 = vmatpush1.msra.mxu0 %v781
  %2069 = vmatprep.subr.mxu0 0.0
  %2070 = vmatpush1.msra.mxu0 %v782
  %2071 = vmatprep.subr.mxu0 0.0
  %2072 = vmatpush1.msra.mxu0 %v783
  %2073 = vmatprep.subr.mxu0 0.0
  %2074 = vmatpush1.msra.mxu0 %v784
  %2075 = vmatprep.subr.mxu0 0.0
  %2076 = vmatpush1.msra.mxu0 %v785
  %2077 = vmatprep.subr.mxu0 0.0
  %2078 = vmatpush1.msra.mxu0 %v786
  %2079 = vmatprep.subr.mxu0 0.0
  %2080 = vmatpush1.msra.mxu0 %v787
  %2081 = vmatprep.subr.mxu0 0.0
  %2082 = vmatpush1.msra.mxu0 %v788
  %2083 = vmatprep.subr.mxu0 0.0
  %2084 = vmatpush1.msra.mxu0 %v789
  %2085 = vmatprep.subr.mxu0 0.0
  %2086 = vmatpush1.msra.mxu0 %v790
  %2087 = vmatprep.subr.mxu0 0.0
  %2088 = vmatpush1.msra.mxu0 %v791
  %2089 = vmatprep.subr.mxu0 0.0
  %2090 = vmatpush1.msra.mxu0 %v792
  %2091 = vmatprep.subr.mxu0 0.0
  %2092 = vmatpush1.msra.mxu0 %v793
  %2093 = vmatprep.mubr.f32.mxu0 %v2022
  %2094 = vmatmul.mubr.f32.gmra.mrb[0].mxu0 %v2021
  %v2095 = vpop.f32.mrb[0].mxu0
  %v2096 = vadd.f32 0.0, %v2095
  %v2097 = vpop.f32.mrb[0].mxu0
  %2098 = vdwg.mxu0
  %2099 = vmatprep.subr.mxu0 0.0
  %2100 = vmatpush1.msra.mxu0 %v794
  %2101 = vmatprep.subr.mxu0 0.0
  %2102 = vmatpush1.msra.mxu0 %v795
  %2103 = vmatprep.subr.mxu0 0.0
  %2104 = vmatpush1.msra.mxu0 %v796
  %2105 = vmatprep.subr.mxu0 0.0
  %2106 = vmatpush1.msra.mxu0 %v797
  %2107 = vmatprep.subr.mxu0 0.0
  %2108 = vmatpush1.msra.mxu0 %v798
  %2109 = vmatprep.subr.mxu0 0.0
  %2110 = vmatpush1.msra.mxu0 %v799
  %2111 = vmatprep.subr.mxu0 0.0
  %2112 = vmatpush1.msra.mxu0 %v800
  %2113 = vmatprep.subr.mxu0 0.0
  %2114 = vmatpush1.msra.mxu0 %v801
  %2115 = vmatprep.subr.mxu0 0.0
  %2116 = vmatpush1.msra.mxu0 %v802
  %2117 = vmatprep.subr.mxu0 0.0
  %2118 = vmatpush1.msra.mxu0 %v803
  %2119 = vmatprep.subr.mxu0 0.0
  %2120 = vmatpush1.msra.mxu0 %v804
  %2121 = vmatprep.subr.mxu0 0.0
  %2122 = vmatpush1.msra.mxu0 %v805
  %2123 = vmatprep.subr.mxu0 0.0
  %2124 = vmatpush1.msra.mxu0 %v806
  %2125 = vmatprep.subr.mxu0 0.0
  %2126 = vmatpush1.msra.mxu0 %v807
  %2127 = vmatprep.subr.mxu0 0.0
  %2128 = vmatpush1.msra.mxu0 %v808
  %2129 = vmatprep.subr.mxu0 0.0
  %2130 = vmatpush1.msra.mxu0 %v809
  %2131 = vmatprep.subr.mxu0 0.0
  %2132 = vmatpush1.msra.mxu0 %v810
  %2133 = vmatprep.subr.mxu0 0.0
  %2134 = vmatpush1.msra.mxu0 %v811
  %2135 = vmatprep.subr.mxu0 0.0
  %2136 = vmatpush1.msra.mxu0 %v812
  %2137 = vmatprep.subr.mxu0 0.0
  %2138 = vmatpush1.msra.mxu0 %v813
  %2139 = vmatprep.subr.mxu0 0.0
  %2140 = vmatpush1.msra.mxu0 %v814
  %2141 = vmatprep.subr.mxu0 0.0
  %2142 = vmatpush1.msra.mxu0 %v815
  %2143 = vmatprep.subr.mxu0 0.0
  %2144 = vmatpush1.msra.mxu0 %v816
  %2145 = vmatprep.subr.mxu0 0.0
  %2146 = vmatpush1.msra.mxu0 %v817
  %2147 = vmatprep.subr.mxu0 0.0
  %2148 = vmatpush1.msra.mxu0 %v818
  %2149 = vmatprep.subr.mxu0 0.0
  %2150 = vmatpush1.msra.mxu0 %v819
  %2151 = vmatprep.subr.mxu0 0.0
  %2152 = vmatpush1.msra.mxu0 %v820
  %2153 = vmatprep.subr.mxu0 0.0
  %2154 = vmatpush1.msra.mxu0 %v821
  %2155 = vmatprep.subr.mxu0 0.0
  %2156 = vmatpush1.msra.mxu0 %v822
  %2157 = vmatprep.subr.mxu0 0.0
  %2158 = vmatpush1.msra.mxu0 %v823
  %2159 = vmatprep.subr.mxu0 0.0
  %2160 = vmatpush1.msra.mxu0 %v824
  %2161 = vmatprep.subr.mxu0 0.0
  %2162 = vmatpush1.msra.mxu0 %v825
  %2163 = vmatprep.mubr.f32.mxu0 %v2024
  %2164 = vmatmul.mubr.f32.gmra.mrb[0].mxu0 %v2023
  %v2165 = vpop.f32.mrb[0].mxu0
  %v2166 = vadd.f32 %v2096, %v2165
  %v2167 = vpop.f32.mrb[0].mxu0
  %2168 = vdwg.mxu0
  %2169 = vst [vmem:[%s6 + $0x4] sm:$0x1] %v2166
  %2170 = vmatprep.subr.mxu0 0.0
  %2171 = vmatpush1.msra.mxu0 %v762
  %2172 = vmatprep.subr.mxu0 0.0
  %2173 = vmatpush1.msra.mxu0 %v763
  %2174 = vmatprep.subr.mxu0 0.0
  %2175 = vmatpush1.msra.mxu0 %v764
  %2176 = vmatprep.subr.mxu0 0.0
  %2177 = vmatpush1.msra.mxu0 %v765
  %2178 = vmatprep.subr.mxu0 0.0
  %2179 = vmatpush1.msra.mxu0 %v766
  %2180 = vmatprep.subr.mxu0 0.0
  %2181 = vmatpush1.msra.mxu0 %v767
  %2182 = vmatprep.subr.mxu0 0.0
  %2183 = vmatpush1.msra.mxu0 %v768
  %2184 = vmatprep.subr.mxu0 0.0
  %2185 = vmatpush1.msra.mxu0 %v769
  %2186 = vmatprep.subr.mxu0 0.0
  %2187 = vmatpush1.msra.mxu0 %v770
  %2188 = vmatprep.subr.mxu0 0.0
  %2189 = vmatpush1.msra.mxu0 %v771
  %2190 = vmatprep.subr.mxu0 0.0
  %2191 = vmatpush1.msra.mxu0 %v772
  %2192 = vmatprep.subr.mxu0 0.0
  %2193 = vmatpush1.msra.mxu0 %v773
  %2194 = vmatprep.subr.mxu0 0.0
  %2195 = vmatpush1.msra.mxu0 %v774
  %2196 = vmatprep.subr.mxu0 0.0
  %2197 = vmatpush1.msra.mxu0 %v775
  %2198 = vmatprep.subr.mxu0 0.0
  %2199 = vmatpush1.msra.mxu0 %v776
  %2200 = vmatprep.subr.mxu0 0.0
  %2201 = vmatpush1.msra.mxu0 %v777
  %2202 = vmatprep.subr.mxu0 0.0
  %2203 = vmatpush1.msra.mxu0 %v778
  %2204 = vmatprep.subr.mxu0 0.0
  %2205 = vmatpush1.msra.mxu0 %v779
  %2206 = vmatprep.subr.mxu0 0.0
  %2207 = vmatpush1.msra.mxu0 %v780
  %2208 = vmatprep.subr.mxu0 0.0
  %2209 = vmatpush1.msra.mxu0 %v781
  %2210 = vmatprep.subr.mxu0 0.0
  %2211 = vmatpush1.msra.mxu0 %v782
  %2212 = vmatprep.subr.mxu0 0.0
  %2213 = vmatpush1.msra.mxu0 %v783
  %2214 = vmatprep.subr.mxu0 0.0
  %2215 = vmatpush1.msra.mxu0 %v784
  %2216 = vmatprep.subr.mxu0 0.0
  %2217 = vmatpush1.msra.mxu0 %v785
  %2218 = vmatprep.subr.mxu0 0.0
  %2219 = vmatpush1.msra.mxu0 %v786
  %2220 = vmatprep.subr.mxu0 0.0
  %2221 = vmatpush1.msra.mxu0 %v787
  %2222 = vmatprep.subr.mxu0 0.0
  %2223 = vmatpush1.msra.mxu0 %v788
  %2224 = vmatprep.subr.mxu0 0.0
  %2225 = vmatpush1.msra.mxu0 %v789
  %2226 = vmatprep.subr.mxu0 0.0
  %2227 = vmatpush1.msra.mxu0 %v790
  %2228 = vmatprep.subr.mxu0 0.0
  %2229 = vmatpush1.msra.mxu0 %v791
  %2230 = vmatprep.subr.mxu0 0.0
  %2231 = vmatpush1.msra.mxu0 %v792
  %2232 = vmatprep.subr.mxu0 0.0
  %2233 = vmatpush1.msra.mxu0 %v793
  %2234 = vmatprep.mubr.f32.mxu0 %v1781
  %2235 = vmatmul.mubr.f32.gmra.mrb[0].mxu0 %v1780
  %v2236 = vpop.f32.mrb[0].mxu0
  %v2237 = vadd.f32 0.0, %v2236
  %v2238 = vpop.f32.mrb[0].mxu0
  %2239 = vdwg.mxu0
  %2240 = vmatprep.subr.mxu0 0.0
  %2241 = vmatpush1.msra.mxu0 %v794
  %2242 = vmatprep.subr.mxu0 0.0
  %2243 = vmatpush1.msra.mxu0 %v795
  %2244 = vmatprep.subr.mxu0 0.0
  %2245 = vmatpush1.msra.mxu0 %v796
  %2246 = vmatprep.subr.mxu0 0.0
  %2247 = vmatpush1.msra.mxu0 %v797
  %2248 = vmatprep.subr.mxu0 0.0
  %2249 = vmatpush1.msra.mxu0 %v798
  %2250 = vmatprep.subr.mxu0 0.0
  %2251 = vmatpush1.msra.mxu0 %v799
  %2252 = vmatprep.subr.mxu0 0.0
  %2253 = vmatpush1.msra.mxu0 %v800
  %2254 = vmatprep.subr.mxu0 0.0
  %2255 = vmatpush1.msra.mxu0 %v801
  %2256 = vmatprep.subr.mxu0 0.0
  %2257 = vmatpush1.msra.mxu0 %v802
  %2258 = vmatprep.subr.mxu0 0.0
  %2259 = vmatpush1.msra.mxu0 %v803
  %2260 = vmatprep.subr.mxu0 0.0
  %2261 = vmatpush1.msra.mxu0 %v804
  %2262 = vmatprep.subr.mxu0 0.0
  %2263 = vmatpush1.msra.mxu0 %v805
  %2264 = vmatprep.subr.mxu0 0.0
  %2265 = vmatpush1.msra.mxu0 %v806
  %2266 = vmatprep.subr.mxu0 0.0
  %2267 = vmatpush1.msra.mxu0 %v807
  %2268 = vmatprep.subr.mxu0 0.0
  %2269 = vmatpush1.msra.mxu0 %v808
  %2270 = vmatprep.subr.mxu0 0.0
  %2271 = vmatpush1.msra.mxu0 %v809
  %2272 = vmatprep.subr.mxu0 0.0
  %2273 = vmatpush1.msra.mxu0 %v810
  %2274 = vmatprep.subr.mxu0 0.0
  %2275 = vmatpush1.msra.mxu0 %v811
  %2276 = vmatprep.subr.mxu0 0.0
  %2277 = vmatpush1.msra.mxu0 %v812
  %2278 = vmatprep.subr.mxu0 0.0
  %2279 = vmatpush1.msra.mxu0 %v813
  %2280 = vmatprep.subr.mxu0 0.0
  %2281 = vmatpush1.msra.mxu0 %v814
  %2282 = vmatprep.subr.mxu0 0.0
  %2283 = vmatpush1.msra.mxu0 %v815
  %2284 = vmatprep.subr.mxu0 0.0
  %2285 = vmatpush1.msra.mxu0 %v816
  %2286 = vmatprep.subr.mxu0 0.0
  %2287 = vmatpush1.msra.mxu0 %v817
  %2288 = vmatprep.subr.mxu0 0.0
  %2289 = vmatpush1.msra.mxu0 %v818
  %2290 = vmatprep.subr.mxu0 0.0
  %2291 = vmatpush1.msra.mxu0 %v819
  %2292 = vmatprep.subr.mxu0 0.0
  %2293 = vmatpush1.msra.mxu0 %v820
  %2294 = vmatprep.subr.mxu0 0.0
  %2295 = vmatpush1.msra.mxu0 %v821
  %2296 = vmatprep.subr.mxu0 0.0
  %2297 = vmatpush1.msra.mxu0 %v822
  %2298 = vmatprep.subr.mxu0 0.0
  %2299 = vmatpush1.msra.mxu0 %v823
  %2300 = vmatprep.subr.mxu0 0.0
  %2301 = vmatpush1.msra.mxu0 %v824
  %2302 = vmatprep.subr.mxu0 0.0
  %2303 = vmatpush1.msra.mxu0 %v825
  %2304 = vmatprep.mubr.f32.mxu0 %v1783
  %2305 = vmatmul.mubr.f32.gmra.mrb[0].mxu0 %v1782
  %v2306 = vpop.f32.mrb[0].mxu0
  %v2307 = vadd.f32 %v2237, %v2306
  %v2308 = vpop.f32.mrb[0].mxu0
  %2309 = vdwg.mxu0
  %2310 = vst [vmem:[%s6 + $0x5] sm:$0x1] %v2307
  // Predicated region
  $region22: #{_forward.1} parent=0 // pred_check
    _
  $region23: #{_forward.1} parent=0 // pred_check_branch
    %2312 = sbr.rel (0) target = $region25
  $region24: #{_forward.1} parent=0 // pred_region
    _
  $region25: #{_forward.1} parent=0 // pred_fallthru
    _
  // Predicated region
  $region26: #{_forward.1} parent=0 // pred_check
    _
  $region27: #{_forward.1} parent=0 // pred_check_branch
    %2314 = sbr.rel (0) target = $region29
  $region28: #{_forward.1} parent=0 // pred_region
    _
  $region29: #{_forward.1} parent=0 // pred_fallthru
    _
  // Predicated region
  $region30: #{_forward.1} parent=0 // pred_check
    _
  $region31: #{_forward.1} parent=0 // pred_check_branch
    %2316 = sbr.rel (0) target = $region33
  $region32: #{_forward.1} parent=0 // pred_region
    _
  $region33: #{_forward.1} parent=0 // pred_fallthru
    _
  // Predicated region
  $region34: #{_forward.1} parent=0 // pred_check
    _
  $region35: #{_forward.1} parent=0 // pred_check_branch
    %2318 = sbr.rel (0) target = $region37
  $region36: #{_forward.1} parent=0 // pred_region
    _
  $region37: #{_forward.1} parent=0 // pred_fallthru
    _

</llo_original>
